<compile_context>
chip_gen: v5e
topology: v5e:2x2
jax: 0.10.0
libtpu: 0.0.40
codegen_flags: <defaults>
</compile_context>

<pallas_src>
import jax
import jax.numpy as jnp
from jax.experimental import pallas as pl
from jax.experimental.pallas import tpu as pltpu

_LANE_CANDIDATES = (4096, 2048, 1024, 512, 256, 128)  # widest lane dim dividing the size
_TARGET_BLOCK_ELEMS = 128 * 1024                      # ~512 KiB per f32 block

# Acklam inverse-normal-CDF rational coefficients (central + lower tail).
_A = (-3.969683028665376e+01, 2.209460984245205e+02, -2.759285104469687e+02,
      1.383577518672690e+02, -3.066479806614716e+01, 2.506628277459239e+00)
_B = (-5.447609879822406e+01, 1.615858368580409e+02, -1.556989798598866e+02,
      6.680131188771972e+01, -1.328068155288572e+01)
_C = (-7.784894002430293e-03, -3.223964580411365e-01, -2.400758277161838e+00,
      -2.549732539343734e+00, 4.374664141464968e+00, 2.938163982698783e+00)
_D = (7.784695709041462e-03, 3.224671290700398e-01, 2.445134137142996e+00,
      3.754408661907416e+00)
_P_LOW = 0.02425


def _hash32(x):
    """lowbias32 integer hash (Wellons): good avalanche, pure VPU int ops."""
    x = x ^ (x >> 16)
    x = x * jnp.uint32(0x7FEB352D)
    x = x ^ (x >> 15)
    x = x * jnp.uint32(0x846CA68B)
    x = x ^ (x >> 16)
    return x


def _polyval(coeffs, x):
    acc = coeffs[0]
    for c in coeffs[1:]:
        acc = acc * x + c
    return acc


def _norm_quantile_lower_half(p):
    """Phi^-1(p) for p in (0, 0.5): Acklam's approximation.

    Uses only log/sqrt/div + polynomials, so it lowers on Mosaic (no trig).
    """
    # Lower tail (p < _P_LOW).
    q = jnp.sqrt(-2.0 * jnp.log(p))
    x_tail = _polyval(_C, q) / (_polyval(_D, q) * q + 1.0)
    # Central region; clamp keeps the rational well-conditioned on lanes that
    # actually take the tail branch (its value there is discarded by `where`).
    qc = jnp.maximum(p, _P_LOW) - 0.5
    r = qc * qc
    x_cent = (_polyval(_A, r) * qc) / (_polyval(_B, r) * r + 1.0)
    return jnp.where(p < _P_LOW, x_tail, x_cent)


def _gaussian_noise_kernel(seed_ref, x_ref, o_ref):
    """o = x + N(0,1); noise from a stateless counter-based RNG."""
    tile_r, tile_c = x_ref.shape

    # Global element index of every element of this tile (unique across the
    # whole tensor -> distinct noise per tile and per TensorCore).
    row = jax.lax.broadcasted_iota(jnp.int32, (tile_r, tile_c), 0).astype(jnp.uint32)
    col = jax.lax.broadcasted_iota(jnp.int32, (tile_r, tile_c), 1).astype(jnp.uint32)
    tile_base = pl.program_id(0).astype(jnp.uint32) * jnp.uint32(tile_r * tile_c)
    idx = tile_base + row * jnp.uint32(tile_c) + col

    seed = seed_ref[0].astype(jnp.uint32)
    bits = _hash32(_hash32(idx ^ (seed * jnp.uint32(0x9E3779B9))))

    # Bits 0..22 -> uniform p in (0, 0.5); bit 31 -> random sign.
    mag = (bits & jnp.uint32(0x7FFFFF)).astype(jnp.int32).astype(jnp.float32)
    p = (mag + 0.5) * (1.0 / (1 << 24))
    half_z = _norm_quantile_lower_half(p)               # <= 0
    noise = jnp.where((bits >> 31) == 0, half_z, -half_z)

    o_ref[...] = (x_ref[...].astype(jnp.float32) + noise).astype(o_ref.dtype)


def gaussian_layer(x, seed, training=True):
    """Pallas implementation of GaussianLayer.forward.

    training=True : x + standard-normal noise (generated in-kernel).
    training=False: identity.
    `seed` may be a Python int or a (possibly traced) int32 scalar; pass a
    fresh value per step to mimic torch.randn_like's fresh draw each forward.
    """
    if not training:
        return x

    orig_shape = x.shape
    total = x.size
    if total == 0:
        return x

    # Lane-dense 2D view: widest last dim (multiple of 128) that divides the
    # flat length, so the hot path needs no pad/slice HBM round-trip.
    lane_w = next((w for w in _LANE_CANDIDATES if total % w == 0), None)
    x_flat = x.reshape(-1)
    pad = 0
    if lane_w is None:
        # TODO(synk): mask the ragged tail in-kernel instead of padding; this
        # fallback costs an extra HBM pass (pad) plus a slice on the way out.
        lane_w = 128
        pad = (-total) % lane_w
        x_flat = jnp.pad(x_flat, (0, pad))
    rows = (total + pad) // lane_w
    x2d = x_flat.reshape(rows, lane_w)

    # Row tile: ~512 KiB per f32 block, multiple of 8 sublanes (or the full
    # row extent); double-buffered in+out stays well inside scoped VMEM.
    if rows <= 8:
        tile_r = rows
    else:
        tile_r = min(rows, max(8, _TARGET_BLOCK_ELEMS // lane_w))
        tile_r = max(8, (tile_r // 8) * 8)
        if tile_r >= rows:
            tile_r = rows
    grid = (pl.cdiv(rows, tile_r),)

    seed_arr = jnp.asarray(seed, dtype=jnp.int32).reshape((1,))

    n = rows * lane_w
    cost = pl.CostEstimate(
        flops=48 * n,                            # hash + inverse-CDF rationals
        transcendentals=4 * n,                   # log, sqrt, 2 divides
        bytes_accessed=2 * n * x.dtype.itemsize,
    )

    extra_kwargs = {}
    if jax.default_backend() == "tpu":
        # Megacore: let v7x split the independent row tiles across both
        # TensorCores; harmless no-op on single-core v5e/v6e.
        extra_kwargs["compiler_params"] = pltpu.CompilerParams(
            dimension_semantics=("parallel",))

    out2d = pl.pallas_call(
        _gaussian_noise_kernel,
        out_shape=jax.ShapeDtypeStruct((rows, lane_w), x.dtype),
        grid=grid,
        in_specs=[
            pl.BlockSpec(memory_space=pltpu.MemorySpace.SMEM),    # seed scalar
            pl.BlockSpec((tile_r, lane_w), lambda i: (i, 0)),     # x row tile
        ],
        out_specs=pl.BlockSpec((tile_r, lane_w), lambda i: (i, 0)),
        cost_estimate=cost,
        **extra_kwargs,
    )(seed_arr, x2d)

    out_flat = out2d.reshape(-1)
    if pad:
        out_flat = out_flat[:total]
    return out_flat.reshape(orig_shape)


if __name__ == "__main__":
    key = jax.random.PRNGKey(0)
    kx, kseed = jax.random.split(key)
    # NCHW conv-style activation: (B=2, C=4, H=16, W=16)
    x = jax.random.normal(kx, (2, 4, 16, 16), dtype=jnp.float32)
    # Fresh per-step seed derived from a JAX PRNG key (deterministic here).
    seed = jax.random.randint(kseed, (), 0, jnp.iinfo(jnp.int32).max, dtype=jnp.int32)

    y_train = jax.block_until_ready(gaussian_layer(x, seed, training=True))
    y_eval = jax.block_until_ready(gaussian_layer(x, seed, training=False))

    assert y_train.shape == x.shape and y_train.dtype == x.dtype
    assert bool(jnp.all(y_eval == x))
    noise = y_train - x
    assert bool(jnp.any(noise != 0.0))
    mean_noise = float(jnp.mean(noise))
    std_noise = float(jnp.std(noise))
    assert abs(mean_noise) < 0.2, mean_noise
    assert 0.7 < std_noise < 1.3, std_noise

    print("KERNEL_OK")
</pallas_src>

<mosaic_0001>
module attributes {stable_mosaic.version = 11 : i64} {
  func.func @_gaussian_noise_kernel(%arg0: i32, %arg1: memref<1xi32, #tpu.memory_space<smem>>, %arg2: memref<1x2048xf32, #tpu.memory_space<vmem>>, %arg3: memref<1x2048xf32, #tpu.memory_space<vmem>>) attributes {dimension_semantics = [#tpu.dimension_semantics<arbitrary>], iteration_bounds = array<i64: 1>, scalar_prefetch = 0 : i64, scratch_operands = 0 : i64, tpu.core_type = #tpu.core_type<tc>, window_params = [{transform_indices = @transform_0, window_bounds = array<i64: 1>}, {transform_indices = @transform_1, window_bounds = array<i64: 1, 2048>}, {transform_indices = @transform_2, window_bounds = array<i64: 1, 2048>}]} {
    %0 = tpu.iota {dimensions = array<i32: 0>} : vector<1x2048xi32>
    %1 = tpu.iota {dimensions = array<i32: 1>} : vector<1x2048xi32>
    %c2048_i32 = arith.constant 2048 : i32
    %2 = arith.muli %arg0, %c2048_i32 : i32
    %c2048_i32_0 = arith.constant 2048 : i32
    %3 = vector.broadcast %c2048_i32_0 : i32 to vector<1x2048xi32>
    %4 = arith.muli %0, %3 : vector<1x2048xi32>
    %5 = vector.broadcast %2 : i32 to vector<1x2048xi32>
    %6 = arith.addi %5, %4 : vector<1x2048xi32>
    %7 = arith.addi %6, %1 : vector<1x2048xi32>
    %c0 = arith.constant 0 : index
    %8 = memref.load %arg1[%c0] : memref<1xi32, #tpu.memory_space<smem>>
    %c-1640531527_i32 = arith.constant -1640531527 : i32
    %9 = arith.muli %8, %c-1640531527_i32 : i32
    %10 = vector.broadcast %9 : i32 to vector<1x2048xi32>
    %11 = arith.xori %7, %10 : vector<1x2048xi32>
    %c16_i32 = arith.constant 16 : i32
    %12 = vector.broadcast %c16_i32 : i32 to vector<1x2048xi32>
    %13 = arith.shrui %11, %12 : vector<1x2048xi32>
    %14 = arith.xori %11, %13 : vector<1x2048xi32>
    %c2146121005_i32 = arith.constant 2146121005 : i32
    %15 = vector.broadcast %c2146121005_i32 : i32 to vector<1x2048xi32>
    %16 = arith.muli %14, %15 : vector<1x2048xi32>
    %c15_i32 = arith.constant 15 : i32
    %17 = vector.broadcast %c15_i32 : i32 to vector<1x2048xi32>
    %18 = arith.shrui %16, %17 : vector<1x2048xi32>
    %19 = arith.xori %16, %18 : vector<1x2048xi32>
    %c-2073254261_i32 = arith.constant -2073254261 : i32
    %20 = vector.broadcast %c-2073254261_i32 : i32 to vector<1x2048xi32>
    %21 = arith.muli %19, %20 : vector<1x2048xi32>
    %c16_i32_1 = arith.constant 16 : i32
    %22 = vector.broadcast %c16_i32_1 : i32 to vector<1x2048xi32>
    %23 = arith.shrui %21, %22 : vector<1x2048xi32>
    %24 = arith.xori %21, %23 : vector<1x2048xi32>
    %c16_i32_2 = arith.constant 16 : i32
    %25 = vector.broadcast %c16_i32_2 : i32 to vector<1x2048xi32>
    %26 = arith.shrui %24, %25 : vector<1x2048xi32>
    %27 = arith.xori %24, %26 : vector<1x2048xi32>
    %c2146121005_i32_3 = arith.constant 2146121005 : i32
    %28 = vector.broadcast %c2146121005_i32_3 : i32 to vector<1x2048xi32>
    %29 = arith.muli %27, %28 : vector<1x2048xi32>
    %c15_i32_4 = arith.constant 15 : i32
    %30 = vector.broadcast %c15_i32_4 : i32 to vector<1x2048xi32>
    %31 = arith.shrui %29, %30 : vector<1x2048xi32>
    %32 = arith.xori %29, %31 : vector<1x2048xi32>
    %c-2073254261_i32_5 = arith.constant -2073254261 : i32
    %33 = vector.broadcast %c-2073254261_i32_5 : i32 to vector<1x2048xi32>
    %34 = arith.muli %32, %33 : vector<1x2048xi32>
    %c16_i32_6 = arith.constant 16 : i32
    %35 = vector.broadcast %c16_i32_6 : i32 to vector<1x2048xi32>
    %36 = arith.shrui %34, %35 : vector<1x2048xi32>
    %37 = arith.xori %34, %36 : vector<1x2048xi32>
    %c8388607_i32 = arith.constant 8388607 : i32
    %38 = vector.broadcast %c8388607_i32 : i32 to vector<1x2048xi32>
    %39 = arith.andi %37, %38 : vector<1x2048xi32>
    %40 = arith.sitofp %39 : vector<1x2048xi32> to vector<1x2048xf32>
    %cst = arith.constant 5.000000e-01 : f32
    %41 = vector.broadcast %cst : f32 to vector<1x2048xf32>
    %42 = arith.addf %40, %41 : vector<1x2048xf32>
    %cst_7 = arith.constant 5.96046448E-8 : f32
    %43 = vector.broadcast %cst_7 : f32 to vector<1x2048xf32>
    %44 = arith.mulf %42, %43 : vector<1x2048xf32>
    %45 = math.log %44 : vector<1x2048xf32>
    %cst_8 = arith.constant -2.000000e+00 : f32
    %46 = vector.broadcast %cst_8 : f32 to vector<1x2048xf32>
    %47 = arith.mulf %46, %45 : vector<1x2048xf32>
    %48 = math.sqrt %47 : vector<1x2048xf32>
    %cst_9 = arith.constant -0.0077848942 : f32
    %49 = vector.broadcast %cst_9 : f32 to vector<1x2048xf32>
    %50 = arith.mulf %49, %48 : vector<1x2048xf32>
    %cst_10 = arith.constant -0.322396457 : f32
    %51 = vector.broadcast %cst_10 : f32 to vector<1x2048xf32>
    %52 = arith.addf %50, %51 : vector<1x2048xf32>
    %53 = arith.mulf %52, %48 : vector<1x2048xf32>
    %cst_11 = arith.constant -2.40075827 : f32
    %54 = vector.broadcast %cst_11 : f32 to vector<1x2048xf32>
    %55 = arith.addf %53, %54 : vector<1x2048xf32>
    %56 = arith.mulf %55, %48 : vector<1x2048xf32>
    %cst_12 = arith.constant -2.54973245 : f32
    %57 = vector.broadcast %cst_12 : f32 to vector<1x2048xf32>
    %58 = arith.addf %56, %57 : vector<1x2048xf32>
    %59 = arith.mulf %58, %48 : vector<1x2048xf32>
    %cst_13 = arith.constant 4.37466431 : f32
    %60 = vector.broadcast %cst_13 : f32 to vector<1x2048xf32>
    %61 = arith.addf %59, %60 : vector<1x2048xf32>
    %62 = arith.mulf %61, %48 : vector<1x2048xf32>
    %cst_14 = arith.constant 2.938164 : f32
    %63 = vector.broadcast %cst_14 : f32 to vector<1x2048xf32>
    %64 = arith.addf %62, %63 : vector<1x2048xf32>
    %cst_15 = arith.constant 0.00778469583 : f32
    %65 = vector.broadcast %cst_15 : f32 to vector<1x2048xf32>
    %66 = arith.mulf %65, %48 : vector<1x2048xf32>
    %cst_16 = arith.constant 0.322467119 : f32
    %67 = vector.broadcast %cst_16 : f32 to vector<1x2048xf32>
    %68 = arith.addf %66, %67 : vector<1x2048xf32>
    %69 = arith.mulf %68, %48 : vector<1x2048xf32>
    %cst_17 = arith.constant 2.44513416 : f32
    %70 = vector.broadcast %cst_17 : f32 to vector<1x2048xf32>
    %71 = arith.addf %69, %70 : vector<1x2048xf32>
    %72 = arith.mulf %71, %48 : vector<1x2048xf32>
    %cst_18 = arith.constant 3.7544086 : f32
    %73 = vector.broadcast %cst_18 : f32 to vector<1x2048xf32>
    %74 = arith.addf %72, %73 : vector<1x2048xf32>
    %75 = arith.mulf %74, %48 : vector<1x2048xf32>
    %cst_19 = arith.constant 1.000000e+00 : f32
    %76 = vector.broadcast %cst_19 : f32 to vector<1x2048xf32>
    %77 = arith.addf %75, %76 : vector<1x2048xf32>
    %78 = arith.divf %64, %77 : vector<1x2048xf32>
    %cst_20 = arith.constant 2.425000e-02 : f32
    %79 = vector.broadcast %cst_20 : f32 to vector<1x2048xf32>
    %80 = arith.maximumf %44, %79 : vector<1x2048xf32>
    %cst_21 = arith.constant 5.000000e-01 : f32
    %81 = vector.broadcast %cst_21 : f32 to vector<1x2048xf32>
    %82 = arith.subf %80, %81 : vector<1x2048xf32>
    %83 = arith.mulf %82, %82 : vector<1x2048xf32>
    %cst_22 = arith.constant -39.6968307 : f32
    %84 = vector.broadcast %cst_22 : f32 to vector<1x2048xf32>
    %85 = arith.mulf %84, %83 : vector<1x2048xf32>
    %cst_23 = arith.constant 220.946106 : f32
    %86 = vector.broadcast %cst_23 : f32 to vector<1x2048xf32>
    %87 = arith.addf %85, %86 : vector<1x2048xf32>
    %88 = arith.mulf %87, %83 : vector<1x2048xf32>
    %cst_24 = arith.constant -275.928497 : f32
    %89 = vector.broadcast %cst_24 : f32 to vector<1x2048xf32>
    %90 = arith.addf %88, %89 : vector<1x2048xf32>
    %91 = arith.mulf %90, %83 : vector<1x2048xf32>
    %cst_25 = arith.constant 138.357758 : f32
    %92 = vector.broadcast %cst_25 : f32 to vector<1x2048xf32>
    %93 = arith.addf %91, %92 : vector<1x2048xf32>
    %94 = arith.mulf %93, %83 : vector<1x2048xf32>
    %cst_26 = arith.constant -30.6647987 : f32
    %95 = vector.broadcast %cst_26 : f32 to vector<1x2048xf32>
    %96 = arith.addf %94, %95 : vector<1x2048xf32>
    %97 = arith.mulf %96, %83 : vector<1x2048xf32>
    %cst_27 = arith.constant 2.50662827 : f32
    %98 = vector.broadcast %cst_27 : f32 to vector<1x2048xf32>
    %99 = arith.addf %97, %98 : vector<1x2048xf32>
    %100 = arith.mulf %99, %82 : vector<1x2048xf32>
    %cst_28 = arith.constant -54.4760971 : f32
    %101 = vector.broadcast %cst_28 : f32 to vector<1x2048xf32>
    %102 = arith.mulf %101, %83 : vector<1x2048xf32>
    %cst_29 = arith.constant 161.585831 : f32
    %103 = vector.broadcast %cst_29 : f32 to vector<1x2048xf32>
    %104 = arith.addf %102, %103 : vector<1x2048xf32>
    %105 = arith.mulf %104, %83 : vector<1x2048xf32>
    %cst_30 = arith.constant -155.698975 : f32
    %106 = vector.broadcast %cst_30 : f32 to vector<1x2048xf32>
    %107 = arith.addf %105, %106 : vector<1x2048xf32>
    %108 = arith.mulf %107, %83 : vector<1x2048xf32>
    %cst_31 = arith.constant 66.8013153 : f32
    %109 = vector.broadcast %cst_31 : f32 to vector<1x2048xf32>
    %110 = arith.addf %108, %109 : vector<1x2048xf32>
    %111 = arith.mulf %110, %83 : vector<1x2048xf32>
    %cst_32 = arith.constant -13.2806816 : f32
    %112 = vector.broadcast %cst_32 : f32 to vector<1x2048xf32>
    %113 = arith.addf %111, %112 : vector<1x2048xf32>
    %114 = arith.mulf %113, %83 : vector<1x2048xf32>
    %cst_33 = arith.constant 1.000000e+00 : f32
    %115 = vector.broadcast %cst_33 : f32 to vector<1x2048xf32>
    %116 = arith.addf %114, %115 : vector<1x2048xf32>
    %117 = arith.divf %100, %116 : vector<1x2048xf32>
    %cst_34 = arith.constant 2.425000e-02 : f32
    %118 = vector.broadcast %cst_34 : f32 to vector<1x2048xf32>
    %119 = arith.cmpf olt, %44, %118 : vector<1x2048xf32>
    %120 = arith.select %119, %78, %117 : vector<1x2048xi1>, vector<1x2048xf32>
    %c31_i32 = arith.constant 31 : i32
    %121 = vector.broadcast %c31_i32 : i32 to vector<1x2048xi32>
    %122 = arith.shrui %37, %121 : vector<1x2048xi32>
    %c0_i32 = arith.constant 0 : i32
    %123 = vector.broadcast %c0_i32 : i32 to vector<1x2048xi32>
    %124 = arith.cmpi eq, %122, %123 : vector<1x2048xi32>
    %cst_35 = arith.constant 0.000000e+00 : f32
    %125 = vector.broadcast %cst_35 : f32 to vector<1x2048xf32>
    %126 = arith.subf %125, %120 : vector<1x2048xf32>
    %127 = arith.select %124, %120, %126 : vector<1x2048xi1>, vector<1x2048xf32>
    %c0_36 = arith.constant 0 : index
    %c0_37 = arith.constant 0 : index
    %128 = vector.load %arg2[%c0_36, %c0_37] : memref<1x2048xf32, #tpu.memory_space<vmem>>, vector<1x2048xf32>
    %129 = arith.addf %128, %127 : vector<1x2048xf32>
    %c0_38 = arith.constant 0 : index
    %c0_39 = arith.constant 0 : index
    %130 = vector.load %arg3[%c0_38, %c0_39] : memref<1x2048xf32, #tpu.memory_space<vmem>>, vector<1x2048xf32>
    tpu.vector_store %arg3[%c0_38, %c0_39], %129 {strides = array<i32>} : memref<1x2048xf32, #tpu.memory_space<vmem>>, vector<1x2048xf32>,
    return
  }
  func.func @transform_0(%arg0: i32) -> i32 {
    %c0_i32 = arith.constant 0 : i32
    %c0_i32_0 = arith.constant 0 : i32
    return %c0_i32 : i32
  }
  func.func @transform_1(%arg0: i32) -> (i32, i32) {
    %c0_i32 = arith.constant 0 : i32
    %c0_i32_0 = arith.constant 0 : i32
    return %arg0, %c0_i32 : i32, i32
  }
  func.func @transform_2(%arg0: i32) -> (i32, i32) {
    %c0_i32 = arith.constant 0 : i32
    %c0_i32_0 = arith.constant 0 : i32
    return %arg0, %c0_i32 : i32, i32
  }
}

</mosaic_0001>

<llo_original>
// kernel: tpu_custom_call.1
$region0: #{tpu_custom_call.1}
  #allocation0 [shape = 'u32[]', space=smem, size = 0x4, offset = 0x4, fixed_abs, tag = 'smem constant byte address 0x4 - core index']
  #allocation1 [shape = 'u32[72,128]{1,0:T(1,128)}', space=vmem, size = 0x9000, scoped, tag = 'internal scratch']
  #allocation2 [shape = 's32[1]{0:T(128)S(6)}', space=smem, size = 0x200, scoped, tag = 'scoped memory for tpu_custom_call.1']
  %s0 = inlined_call_operand.<no memory space> [shape: s32[1], index: 0, kind: input, shape index: {}]
  %s1 = inlined_call_operand.hbm [shape: f32[1,2048], index: 1, kind: input, shape index: {}]
  %s2 = inlined_call_operand.hbm [shape: f32[1,2048], index: 2, kind: output, shape index: {}]
  %s3 = sld [smem:[#allocation0]]
  $region22: #{tpu_custom_call.1} parent=0
    _
  %s5 = ssub.s32 1, %s3
  %s6 = scalar_select 0, %s5, %s3
  %7 = sst [smem:[#allocation2]] %s0
  $region1: #{tpu_custom_call.1} parent=0
    #allocation3 [shape = 'u8[8192]{0}', space=vmem, size = 0x2000, scoped, tag = 'input window, operand 1, single buffered']
    #allocation4 [shape = 's32[1]{0}', space=sflag, size = 0x4, scoped, tag = 'scoped memory for tpu_custom_call.1']
    #allocation5 [shape = 's32[1]{0}', space=sflag, size = 0x4, scoped, tag = 'scoped memory for tpu_custom_call.1']
    #allocation6 [shape = 'u8[8192]{0}', space=vmem, size = 0x2000, scoped, tag = 'output window, operand 0, single buffered']
    %8 = vsyncpa [#allocation4], 0
    %9 = vsyncpa [#allocation5], 0
    // Predicated region
    $region2: #{tpu_custom_call.1} parent=1 // pred_check
      _
    $region3: #{tpu_custom_call.1} parent=1 // pred_check_branch
      %11 = sbr.rel (0) target = $region5
    $region4: #{tpu_custom_call.1} parent=1 // pred_region
      _
    $region5: #{tpu_custom_call.1} parent=1 // pred_fallthru
      _
    // Predicated region
    $region6: #{tpu_custom_call.1} parent=1 // pred_check
      _
    $region7: #{tpu_custom_call.1} parent=1 // pred_check_branch
      %13 = sbr.rel (0) target = $region9
    $region8: #{tpu_custom_call.1} parent=1 // pred_region
      %15 = vsyncadd [#allocation4], 0
      %s17 = sshll.u32 %s1, 4
      %s18 = int_to_ptr.hbm [resolvable:$true] %s17
      %s19 = sshll.u32 [#allocation3], 4
      %s20 = int_to_ptr.vmem [resolvable:$true] %s19
      %22 = dma.hbm_to_vmem [thread:$0]  %s18, 256, %s20, [#allocation4]
    $region9: #{tpu_custom_call.1} parent=1 // pred_fallthru
      _
    // Predicated region
    $region10: #{tpu_custom_call.1} parent=1 // pred_check
      _
    $region11: #{tpu_custom_call.1} parent=1 // pred_check_branch
      %24 = sbr.rel (0) target = $region13
    $region12: #{tpu_custom_call.1} parent=1 // pred_region
      %26 = dma.done [#allocation4], 256
    $region13: #{tpu_custom_call.1} parent=1 // pred_fallthru
      _
    %v27 = vlaneseq
    %v28 = vshrl.u32 %v27, 7
    %v29 = vlaneseq
    %v30 = vand.u32 %v29, 127
    %v31 = vadd.s32 %v30, 128
    %v32 = vadd.s32 %v30, 256
    %v33 = vadd.s32 %v30, 384
    %v34 = vadd.s32 %v30, 512
    %v35 = vadd.s32 %v30, 640
    %v36 = vadd.s32 %v30, 768
    %v37 = vadd.s32 %v30, 896
    %v38 = vadd.s32 %v30, 1024
    %v39 = vadd.s32 %v30, 1152
    %v40 = vadd.s32 %v30, 1280
    %v41 = vadd.s32 %v30, 1408
    %v42 = vadd.s32 %v30, 1536
    %v43 = vadd.s32 %v30, 1664
    %v44 = vadd.s32 %v30, 1792
    %v45 = vadd.s32 %v30, 1920
    %s46 = smul.u32 0, 2048
    %v47 = vmul.u32 %v28, 2048
    %v48 = vstv %s46
    %v49 = vadd.s32 %v48, %v47
    %v50 = vadd.s32 %v49, %v30
    %v51 = vadd.s32 %v49, %v31
    %v52 = vadd.s32 %v49, %v32
    %v53 = vadd.s32 %v49, %v33
    %v54 = vadd.s32 %v49, %v34
    %v55 = vadd.s32 %v49, %v35
    %v56 = vadd.s32 %v49, %v36
    %v57 = vadd.s32 %v49, %v37
    %v58 = vadd.s32 %v49, %v38
    %v59 = vadd.s32 %v49, %v39
    %v60 = vadd.s32 %v49, %v40
    %v61 = vadd.s32 %v49, %v41
    %v62 = vadd.s32 %v49, %v42
    %v63 = vadd.s32 %v49, %v43
    %v64 = vadd.s32 %v49, %v44
    %v65 = vadd.s32 %v49, %v45
    %s66 = sld [smem:[#allocation2]]
    %s67 = smul.u32 %s66, 2654435769
    %v68 = vstv %s67
    %v69 = vxor.u32 %v50, %v68
    %v70 = vxor.u32 %v51, %v68
    %v71 = vxor.u32 %v52, %v68
    %v72 = vxor.u32 %v53, %v68
    %v73 = vxor.u32 %v54, %v68
    %v74 = vxor.u32 %v55, %v68
    %v75 = vxor.u32 %v56, %v68
    %v76 = vxor.u32 %v57, %v68
    %v77 = vxor.u32 %v58, %v68
    %v78 = vxor.u32 %v59, %v68
    %v79 = vxor.u32 %v60, %v68
    %v80 = vxor.u32 %v61, %v68
    %v81 = vxor.u32 %v62, %v68
    %v82 = vxor.u32 %v63, %v68
    %v83 = vxor.u32 %v64, %v68
    %v84 = vxor.u32 %v65, %v68
    %v85 = vshrl.u32 %v69, 16
    %v86 = vshrl.u32 %v70, 16
    %v87 = vshrl.u32 %v71, 16
    %v88 = vshrl.u32 %v72, 16
    %v89 = vshrl.u32 %v73, 16
    %v90 = vshrl.u32 %v74, 16
    %v91 = vshrl.u32 %v75, 16
    %v92 = vshrl.u32 %v76, 16
    %v93 = vshrl.u32 %v77, 16
    %v94 = vshrl.u32 %v78, 16
    %v95 = vshrl.u32 %v79, 16
    %v96 = vshrl.u32 %v80, 16
    %v97 = vshrl.u32 %v81, 16
    %v98 = vshrl.u32 %v82, 16
    %v99 = vshrl.u32 %v83, 16
    %v100 = vshrl.u32 %v84, 16
    %v101 = vxor.u32 %v69, %v85
    %v102 = vxor.u32 %v70, %v86
    %v103 = vxor.u32 %v71, %v87
    %v104 = vxor.u32 %v72, %v88
    %v105 = vxor.u32 %v73, %v89
    %v106 = vxor.u32 %v74, %v90
    %v107 = vxor.u32 %v75, %v91
    %v108 = vxor.u32 %v76, %v92
    %v109 = vxor.u32 %v77, %v93
    %v110 = vxor.u32 %v78, %v94
    %v111 = vxor.u32 %v79, %v95
    %v112 = vxor.u32 %v80, %v96
    %v113 = vxor.u32 %v81, %v97
    %v114 = vxor.u32 %v82, %v98
    %v115 = vxor.u32 %v83, %v99
    %v116 = vxor.u32 %v84, %v100
    %v117 = vmul.u32 %v101, 2146121005
    %v118 = vmul.u32 %v102, 2146121005
    %v119 = vmul.u32 %v103, 2146121005
    %v120 = vmul.u32 %v104, 2146121005
    %v121 = vmul.u32 %v105, 2146121005
    %v122 = vmul.u32 %v106, 2146121005
    %v123 = vmul.u32 %v107, 2146121005
    %v124 = vmul.u32 %v108, 2146121005
    %v125 = vmul.u32 %v109, 2146121005
    %v126 = vmul.u32 %v110, 2146121005
    %v127 = vmul.u32 %v111, 2146121005
    %v128 = vmul.u32 %v112, 2146121005
    %v129 = vmul.u32 %v113, 2146121005
    %v130 = vmul.u32 %v114, 2146121005
    %v131 = vmul.u32 %v115, 2146121005
    %v132 = vmul.u32 %v116, 2146121005
    %v133 = vshrl.u32 %v117, 15
    %v134 = vshrl.u32 %v118, 15
    %v135 = vshrl.u32 %v119, 15
    %v136 = vshrl.u32 %v120, 15
    %v137 = vshrl.u32 %v121, 15
    %v138 = vshrl.u32 %v122, 15
    %v139 = vshrl.u32 %v123, 15
    %v140 = vshrl.u32 %v124, 15
    %v141 = vshrl.u32 %v125, 15
    %v142 = vshrl.u32 %v126, 15
    %v143 = vshrl.u32 %v127, 15
    %v144 = vshrl.u32 %v128, 15
    %v145 = vshrl.u32 %v129, 15
    %v146 = vshrl.u32 %v130, 15
    %v147 = vshrl.u32 %v131, 15
    %v148 = vshrl.u32 %v132, 15
    %v149 = vxor.u32 %v117, %v133
    %v150 = vxor.u32 %v118, %v134
    %v151 = vxor.u32 %v119, %v135
    %v152 = vxor.u32 %v120, %v136
    %v153 = vxor.u32 %v121, %v137
    %v154 = vxor.u32 %v122, %v138
    %v155 = vxor.u32 %v123, %v139
    %v156 = vxor.u32 %v124, %v140
    %v157 = vxor.u32 %v125, %v141
    %v158 = vxor.u32 %v126, %v142
    %v159 = vxor.u32 %v127, %v143
    %v160 = vxor.u32 %v128, %v144
    %v161 = vxor.u32 %v129, %v145
    %v162 = vxor.u32 %v130, %v146
    %v163 = vxor.u32 %v131, %v147
    %v164 = vxor.u32 %v132, %v148
    %v165 = vmul.u32 %v149, 2221713035
    %v166 = vmul.u32 %v150, 2221713035
    %v167 = vmul.u32 %v151, 2221713035
    %v168 = vmul.u32 %v152, 2221713035
    %v169 = vmul.u32 %v153, 2221713035
    %v170 = vmul.u32 %v154, 2221713035
    %v171 = vmul.u32 %v155, 2221713035
    %v172 = vmul.u32 %v156, 2221713035
    %v173 = vmul.u32 %v157, 2221713035
    %v174 = vmul.u32 %v158, 2221713035
    %v175 = vmul.u32 %v159, 2221713035
    %v176 = vmul.u32 %v160, 2221713035
    %v177 = vmul.u32 %v161, 2221713035
    %v178 = vmul.u32 %v162, 2221713035
    %v179 = vmul.u32 %v163, 2221713035
    %v180 = vmul.u32 %v164, 2221713035
    %v181 = vshrl.u32 %v165, 16
    %v182 = vshrl.u32 %v166, 16
    %v183 = vshrl.u32 %v167, 16
    %v184 = vshrl.u32 %v168, 16
    %v185 = vshrl.u32 %v169, 16
    %v186 = vshrl.u32 %v170, 16
    %v187 = vshrl.u32 %v171, 16
    %v188 = vshrl.u32 %v172, 16
    %v189 = vshrl.u32 %v173, 16
    %v190 = vshrl.u32 %v174, 16
    %v191 = vshrl.u32 %v175, 16
    %v192 = vshrl.u32 %v176, 16
    %v193 = vshrl.u32 %v177, 16
    %v194 = vshrl.u32 %v178, 16
    %v195 = vshrl.u32 %v179, 16
    %v196 = vshrl.u32 %v180, 16
    %v197 = vxor.u32 %v165, %v181
    %v198 = vxor.u32 %v166, %v182
    %v199 = vxor.u32 %v167, %v183
    %v200 = vxor.u32 %v168, %v184
    %v201 = vxor.u32 %v169, %v185
    %v202 = vxor.u32 %v170, %v186
    %v203 = vxor.u32 %v171, %v187
    %v204 = vxor.u32 %v172, %v188
    %v205 = vxor.u32 %v173, %v189
    %v206 = vxor.u32 %v174, %v190
    %v207 = vxor.u32 %v175, %v191
    %v208 = vxor.u32 %v176, %v192
    %v209 = vxor.u32 %v177, %v193
    %v210 = vxor.u32 %v178, %v194
    %v211 = vxor.u32 %v179, %v195
    %v212 = vxor.u32 %v180, %v196
    %v213 = vshrl.u32 %v197, 16
    %v214 = vshrl.u32 %v198, 16
    %v215 = vshrl.u32 %v199, 16
    %v216 = vshrl.u32 %v200, 16
    %v217 = vshrl.u32 %v201, 16
    %v218 = vshrl.u32 %v202, 16
    %v219 = vshrl.u32 %v203, 16
    %v220 = vshrl.u32 %v204, 16
    %v221 = vshrl.u32 %v205, 16
    %v222 = vshrl.u32 %v206, 16
    %v223 = vshrl.u32 %v207, 16
    %v224 = vshrl.u32 %v208, 16
    %v225 = vshrl.u32 %v209, 16
    %v226 = vshrl.u32 %v210, 16
    %v227 = vshrl.u32 %v211, 16
    %v228 = vshrl.u32 %v212, 16
    %v229 = vxor.u32 %v197, %v213
    %v230 = vxor.u32 %v198, %v214
    %v231 = vxor.u32 %v199, %v215
    %v232 = vxor.u32 %v200, %v216
    %v233 = vxor.u32 %v201, %v217
    %v234 = vxor.u32 %v202, %v218
    %v235 = vxor.u32 %v203, %v219
    %v236 = vxor.u32 %v204, %v220
    %v237 = vxor.u32 %v205, %v221
    %v238 = vxor.u32 %v206, %v222
    %v239 = vxor.u32 %v207, %v223
    %v240 = vxor.u32 %v208, %v224
    %v241 = vxor.u32 %v209, %v225
    %v242 = vxor.u32 %v210, %v226
    %v243 = vxor.u32 %v211, %v227
    %v244 = vxor.u32 %v212, %v228
    %v245 = vmul.u32 %v229, 2146121005
    %v246 = vmul.u32 %v230, 2146121005
    %v247 = vmul.u32 %v231, 2146121005
    %v248 = vmul.u32 %v232, 2146121005
    %v249 = vmul.u32 %v233, 2146121005
    %v250 = vmul.u32 %v234, 2146121005
    %v251 = vmul.u32 %v235, 2146121005
    %v252 = vmul.u32 %v236, 2146121005
    %v253 = vmul.u32 %v237, 2146121005
    %v254 = vmul.u32 %v238, 2146121005
    %v255 = vmul.u32 %v239, 2146121005
    %v256 = vmul.u32 %v240, 2146121005
    %v257 = vmul.u32 %v241, 2146121005
    %v258 = vmul.u32 %v242, 2146121005
    %v259 = vmul.u32 %v243, 2146121005
    %v260 = vmul.u32 %v244, 2146121005
    %v261 = vshrl.u32 %v245, 15
    %v262 = vshrl.u32 %v246, 15
    %v263 = vshrl.u32 %v247, 15
    %v264 = vshrl.u32 %v248, 15
    %v265 = vshrl.u32 %v249, 15
    %v266 = vshrl.u32 %v250, 15
    %v267 = vshrl.u32 %v251, 15
    %v268 = vshrl.u32 %v252, 15
    %v269 = vshrl.u32 %v253, 15
    %v270 = vshrl.u32 %v254, 15
    %v271 = vshrl.u32 %v255, 15
    %v272 = vshrl.u32 %v256, 15
    %v273 = vshrl.u32 %v257, 15
    %v274 = vshrl.u32 %v258, 15
    %v275 = vshrl.u32 %v259, 15
    %v276 = vshrl.u32 %v260, 15
    %v277 = vxor.u32 %v245, %v261
    %v278 = vxor.u32 %v246, %v262
    %v279 = vxor.u32 %v247, %v263
    %v280 = vxor.u32 %v248, %v264
    %v281 = vxor.u32 %v249, %v265
    %v282 = vxor.u32 %v250, %v266
    %v283 = vxor.u32 %v251, %v267
    %v284 = vxor.u32 %v252, %v268
    %v285 = vxor.u32 %v253, %v269
    %v286 = vxor.u32 %v254, %v270
    %v287 = vxor.u32 %v255, %v271
    %v288 = vxor.u32 %v256, %v272
    %v289 = vxor.u32 %v257, %v273
    %v290 = vxor.u32 %v258, %v274
    %v291 = vxor.u32 %v259, %v275
    %v292 = vxor.u32 %v260, %v276
    %v293 = vmul.u32 %v277, 2221713035
    %v294 = vmul.u32 %v278, 2221713035
    %v295 = vmul.u32 %v279, 2221713035
    %v296 = vmul.u32 %v280, 2221713035
    %v297 = vmul.u32 %v281, 2221713035
    %v298 = vmul.u32 %v282, 2221713035
    %v299 = vmul.u32 %v283, 2221713035
    %v300 = vmul.u32 %v284, 2221713035
    %v301 = vmul.u32 %v285, 2221713035
    %v302 = vmul.u32 %v286, 2221713035
    %v303 = vmul.u32 %v287, 2221713035
    %v304 = vmul.u32 %v288, 2221713035
    %v305 = vmul.u32 %v289, 2221713035
    %v306 = vmul.u32 %v290, 2221713035
    %v307 = vmul.u32 %v291, 2221713035
    %v308 = vmul.u32 %v292, 2221713035
    %v309 = vshrl.u32 %v293, 16
    %v310 = vshrl.u32 %v294, 16
    %v311 = vshrl.u32 %v295, 16
    %v312 = vshrl.u32 %v296, 16
    %v313 = vshrl.u32 %v297, 16
    %v314 = vshrl.u32 %v298, 16
    %v315 = vshrl.u32 %v299, 16
    %v316 = vshrl.u32 %v300, 16
    %v317 = vshrl.u32 %v301, 16
    %v318 = vshrl.u32 %v302, 16
    %v319 = vshrl.u32 %v303, 16
    %v320 = vshrl.u32 %v304, 16
    %v321 = vshrl.u32 %v305, 16
    %v322 = vshrl.u32 %v306, 16
    %v323 = vshrl.u32 %v307, 16
    %v324 = vshrl.u32 %v308, 16
    %v325 = vxor.u32 %v293, %v309
    %v326 = vxor.u32 %v294, %v310
    %v327 = vxor.u32 %v295, %v311
    %v328 = vxor.u32 %v296, %v312
    %v329 = vxor.u32 %v297, %v313
    %v330 = vxor.u32 %v298, %v314
    %v331 = vxor.u32 %v299, %v315
    %v332 = vxor.u32 %v300, %v316
    %v333 = vxor.u32 %v301, %v317
    %v334 = vxor.u32 %v302, %v318
    %v335 = vxor.u32 %v303, %v319
    %v336 = vxor.u32 %v304, %v320
    %v337 = vxor.u32 %v305, %v321
    %v338 = vxor.u32 %v306, %v322
    %v339 = vxor.u32 %v307, %v323
    %v340 = vxor.u32 %v308, %v324
    %v341 = vand.u32 %v325, 8388607
    %v342 = vand.u32 %v326, 8388607
    %v343 = vand.u32 %v327, 8388607
    %v344 = vand.u32 %v328, 8388607
    %v345 = vand.u32 %v329, 8388607
    %v346 = vand.u32 %v330, 8388607
    %v347 = vand.u32 %v331, 8388607
    %v348 = vand.u32 %v332, 8388607
    %v349 = vand.u32 %v333, 8388607
    %v350 = vand.u32 %v334, 8388607
    %v351 = vand.u32 %v335, 8388607
    %v352 = vand.u32 %v336, 8388607
    %v353 = vand.u32 %v337, 8388607
    %v354 = vand.u32 %v338, 8388607
    %v355 = vand.u32 %v339, 8388607
    %v356 = vand.u32 %v340, 8388607
    %v357 = vcvt.s32.f32 %v341
    %v358 = vcvt.s32.f32 %v342
    %v359 = vcvt.s32.f32 %v343
    %v360 = vcvt.s32.f32 %v344
    %v361 = vcvt.s32.f32 %v345
    %v362 = vcvt.s32.f32 %v346
    %v363 = vcvt.s32.f32 %v347
    %v364 = vcvt.s32.f32 %v348
    %v365 = vcvt.s32.f32 %v349
    %v366 = vcvt.s32.f32 %v350
    %v367 = vcvt.s32.f32 %v351
    %v368 = vcvt.s32.f32 %v352
    %v369 = vcvt.s32.f32 %v353
    %v370 = vcvt.s32.f32 %v354
    %v371 = vcvt.s32.f32 %v355
    %v372 = vcvt.s32.f32 %v356
    %v373 = vadd.f32 %v357, 0.5
    %v374 = vadd.f32 %v358, 0.5
    %v375 = vadd.f32 %v359, 0.5
    %v376 = vadd.f32 %v360, 0.5
    %v377 = vadd.f32 %v361, 0.5
    %v378 = vadd.f32 %v362, 0.5
    %v379 = vadd.f32 %v363, 0.5
    %v380 = vadd.f32 %v364, 0.5
    %v381 = vadd.f32 %v365, 0.5
    %v382 = vadd.f32 %v366, 0.5
    %v383 = vadd.f32 %v367, 0.5
    %v384 = vadd.f32 %v368, 0.5
    %v385 = vadd.f32 %v369, 0.5
    %v386 = vadd.f32 %v370, 0.5
    %v387 = vadd.f32 %v371, 0.5
    %v388 = vadd.f32 %v372, 0.5
    %v389 = vmul.f32 %v373, 5.9604645e-08
    %v390 = vmul.f32 %v374, 5.9604645e-08
    %v391 = vmul.f32 %v375, 5.9604645e-08
    %v392 = vmul.f32 %v376, 5.9604645e-08
    %v393 = vmul.f32 %v377, 5.9604645e-08
    %v394 = vmul.f32 %v378, 5.9604645e-08
    %v395 = vmul.f32 %v379, 5.9604645e-08
    %v396 = vmul.f32 %v380, 5.9604645e-08
    %v397 = vmul.f32 %v381, 5.9604645e-08
    %v398 = vmul.f32 %v382, 5.9604645e-08
    %v399 = vmul.f32 %v383, 5.9604645e-08
    %v400 = vmul.f32 %v384, 5.9604645e-08
    %v401 = vmul.f32 %v385, 5.9604645e-08
    %v402 = vmul.f32 %v386, 5.9604645e-08
    %v403 = vmul.f32 %v387, 5.9604645e-08
    %v404 = vmul.f32 %v388, 5.9604645e-08
    %v405 = vlog2.pop %v389
    %v406 = vmul.f32 %v405, 0.6931472
    %v407 = vlog2.pop %v390
    %v408 = vmul.f32 %v407, 0.6931472
    %v409 = vlog2.pop %v391
    %v410 = vmul.f32 %v409, 0.6931472
    %v411 = vlog2.pop %v392
    %v412 = vmul.f32 %v411, 0.6931472
    %v413 = vlog2.pop %v393
    %v414 = vmul.f32 %v413, 0.6931472
    %v415 = vlog2.pop %v394
    %v416 = vmul.f32 %v415, 0.6931472
    %v417 = vlog2.pop %v395
    %v418 = vmul.f32 %v417, 0.6931472
    %v419 = vlog2.pop %v396
    %v420 = vmul.f32 %v419, 0.6931472
    %v421 = vlog2.pop %v397
    %v422 = vmul.f32 %v421, 0.6931472
    %v423 = vlog2.pop %v398
    %v424 = vmul.f32 %v423, 0.6931472
    %v425 = vlog2.pop %v399
    %v426 = vmul.f32 %v425, 0.6931472
    %v427 = vlog2.pop %v400
    %v428 = vmul.f32 %v427, 0.6931472
    %v429 = vlog2.pop %v401
    %v430 = vmul.f32 %v429, 0.6931472
    %v431 = vlog2.pop %v402
    %v432 = vmul.f32 %v431, 0.6931472
    %v433 = vlog2.pop %v403
    %v434 = vmul.f32 %v433, 0.6931472
    %v435 = vlog2.pop %v404
    %v436 = vmul.f32 %v435, 0.6931472
    %v437 = vmul.f32 %v406, -2.0
    %v438 = vmul.f32 %v408, -2.0
    %v439 = vmul.f32 %v410, -2.0
    %v440 = vmul.f32 %v412, -2.0
    %v441 = vmul.f32 %v414, -2.0
    %v442 = vmul.f32 %v416, -2.0
    %v443 = vmul.f32 %v418, -2.0
    %v444 = vmul.f32 %v420, -2.0
    %v445 = vmul.f32 %v422, -2.0
    %v446 = vmul.f32 %v424, -2.0
    %v447 = vmul.f32 %v426, -2.0
    %v448 = vmul.f32 %v428, -2.0
    %v449 = vmul.f32 %v430, -2.0
    %v450 = vmul.f32 %v432, -2.0
    %v451 = vmul.f32 %v434, -2.0
    %v452 = vmul.f32 %v436, -2.0
    %v453 = vrsqrt.pop %v437
    %v454 = vmul.f32 %v453, %v437
    %v455 = vmul.f32 %v454, %v453
    %v456 = vmul.f32 0.5, %v455
    %v457 = vsub.f32 1.5, %v456
    %v458 = vmul.f32 %v453, %v457
    %v459 = vmul.f32 %v437, %v458
    %vm460 = vcmp.eq.f32.partialorder %v437, inf
    %v461 = vsel %vm460, %v437, %v459
    %vm462 = vcmp.eq.f32.partialorder %v437, 0.0
    %v463 = vand.u32 %v437, 2147483648
    %v464 = vsel %vm462, %v463, %v461
    %v465 = vrsqrt.pop %v438
    %v466 = vmul.f32 %v465, %v438
    %v467 = vmul.f32 %v466, %v465
    %v468 = vmul.f32 0.5, %v467
    %v469 = vsub.f32 1.5, %v468
    %v470 = vmul.f32 %v465, %v469
    %v471 = vmul.f32 %v438, %v470
    %vm472 = vcmp.eq.f32.partialorder %v438, inf
    %v473 = vsel %vm472, %v438, %v471
    %vm474 = vcmp.eq.f32.partialorder %v438, 0.0
    %v475 = vand.u32 %v438, 2147483648
    %v476 = vsel %vm474, %v475, %v473
    %v477 = vrsqrt.pop %v439
    %v478 = vmul.f32 %v477, %v439
    %v479 = vmul.f32 %v478, %v477
    %v480 = vmul.f32 0.5, %v479
    %v481 = vsub.f32 1.5, %v480
    %v482 = vmul.f32 %v477, %v481
    %v483 = vmul.f32 %v439, %v482
    %vm484 = vcmp.eq.f32.partialorder %v439, inf
    %v485 = vsel %vm484, %v439, %v483
    %vm486 = vcmp.eq.f32.partialorder %v439, 0.0
    %v487 = vand.u32 %v439, 2147483648
    %v488 = vsel %vm486, %v487, %v485
    %v489 = vrsqrt.pop %v440
    %v490 = vmul.f32 %v489, %v440
    %v491 = vmul.f32 %v490, %v489
    %v492 = vmul.f32 0.5, %v491
    %v493 = vsub.f32 1.5, %v492
    %v494 = vmul.f32 %v489, %v493
    %v495 = vmul.f32 %v440, %v494
    %vm496 = vcmp.eq.f32.partialorder %v440, inf
    %v497 = vsel %vm496, %v440, %v495
    %vm498 = vcmp.eq.f32.partialorder %v440, 0.0
    %v499 = vand.u32 %v440, 2147483648
    %v500 = vsel %vm498, %v499, %v497
    %v501 = vrsqrt.pop %v441
    %v502 = vmul.f32 %v501, %v441
    %v503 = vmul.f32 %v502, %v501
    %v504 = vmul.f32 0.5, %v503
    %v505 = vsub.f32 1.5, %v504
    %v506 = vmul.f32 %v501, %v505
    %v507 = vmul.f32 %v441, %v506
    %vm508 = vcmp.eq.f32.partialorder %v441, inf
    %v509 = vsel %vm508, %v441, %v507
    %vm510 = vcmp.eq.f32.partialorder %v441, 0.0
    %v511 = vand.u32 %v441, 2147483648
    %v512 = vsel %vm510, %v511, %v509
    %v513 = vrsqrt.pop %v442
    %v514 = vmul.f32 %v513, %v442
    %v515 = vmul.f32 %v514, %v513
    %v516 = vmul.f32 0.5, %v515
    %v517 = vsub.f32 1.5, %v516
    %v518 = vmul.f32 %v513, %v517
    %v519 = vmul.f32 %v442, %v518
    %vm520 = vcmp.eq.f32.partialorder %v442, inf
    %v521 = vsel %vm520, %v442, %v519
    %vm522 = vcmp.eq.f32.partialorder %v442, 0.0
    %v523 = vand.u32 %v442, 2147483648
    %v524 = vsel %vm522, %v523, %v521
    %v525 = vrsqrt.pop %v443
    %v526 = vmul.f32 %v525, %v443
    %v527 = vmul.f32 %v526, %v525
    %v528 = vmul.f32 0.5, %v527
    %v529 = vsub.f32 1.5, %v528
    %v530 = vmul.f32 %v525, %v529
    %v531 = vmul.f32 %v443, %v530
    %vm532 = vcmp.eq.f32.partialorder %v443, inf
    %v533 = vsel %vm532, %v443, %v531
    %vm534 = vcmp.eq.f32.partialorder %v443, 0.0
    %v535 = vand.u32 %v443, 2147483648
    %v536 = vsel %vm534, %v535, %v533
    %v537 = vrsqrt.pop %v444
    %v538 = vmul.f32 %v537, %v444
    %v539 = vmul.f32 %v538, %v537
    %v540 = vmul.f32 0.5, %v539
    %v541 = vsub.f32 1.5, %v540
    %v542 = vmul.f32 %v537, %v541
    %v543 = vmul.f32 %v444, %v542
    %vm544 = vcmp.eq.f32.partialorder %v444, inf
    %v545 = vsel %vm544, %v444, %v543
    %vm546 = vcmp.eq.f32.partialorder %v444, 0.0
    %v547 = vand.u32 %v444, 2147483648
    %v548 = vsel %vm546, %v547, %v545
    %v549 = vrsqrt.pop %v445
    %v550 = vmul.f32 %v549, %v445
    %v551 = vmul.f32 %v550, %v549
    %v552 = vmul.f32 0.5, %v551
    %v553 = vsub.f32 1.5, %v552
    %v554 = vmul.f32 %v549, %v553
    %v555 = vmul.f32 %v445, %v554
    %vm556 = vcmp.eq.f32.partialorder %v445, inf
    %v557 = vsel %vm556, %v445, %v555
    %vm558 = vcmp.eq.f32.partialorder %v445, 0.0
    %v559 = vand.u32 %v445, 2147483648
    %v560 = vsel %vm558, %v559, %v557
    %v561 = vrsqrt.pop %v446
    %v562 = vmul.f32 %v561, %v446
    %v563 = vmul.f32 %v562, %v561
    %v564 = vmul.f32 0.5, %v563
    %v565 = vsub.f32 1.5, %v564
    %v566 = vmul.f32 %v561, %v565
    %v567 = vmul.f32 %v446, %v566
    %vm568 = vcmp.eq.f32.partialorder %v446, inf
    %v569 = vsel %vm568, %v446, %v567
    %vm570 = vcmp.eq.f32.partialorder %v446, 0.0
    %v571 = vand.u32 %v446, 2147483648
    %v572 = vsel %vm570, %v571, %v569
    %v573 = vrsqrt.pop %v447
    %v574 = vmul.f32 %v573, %v447
    %v575 = vmul.f32 %v574, %v573
    %v576 = vmul.f32 0.5, %v575
    %v577 = vsub.f32 1.5, %v576
    %v578 = vmul.f32 %v573, %v577
    %v579 = vmul.f32 %v447, %v578
    %vm580 = vcmp.eq.f32.partialorder %v447, inf
    %v581 = vsel %vm580, %v447, %v579
    %vm582 = vcmp.eq.f32.partialorder %v447, 0.0
    %v583 = vand.u32 %v447, 2147483648
    %v584 = vsel %vm582, %v583, %v581
    %v585 = vrsqrt.pop %v448
    %v586 = vmul.f32 %v585, %v448
    %v587 = vmul.f32 %v586, %v585
    %v588 = vmul.f32 0.5, %v587
    %v589 = vsub.f32 1.5, %v588
    %v590 = vmul.f32 %v585, %v589
    %v591 = vmul.f32 %v448, %v590
    %vm592 = vcmp.eq.f32.partialorder %v448, inf
    %v593 = vsel %vm592, %v448, %v591
    %vm594 = vcmp.eq.f32.partialorder %v448, 0.0
    %v595 = vand.u32 %v448, 2147483648
    %v596 = vsel %vm594, %v595, %v593
    %v597 = vrsqrt.pop %v449
    %v598 = vmul.f32 %v597, %v449
    %v599 = vmul.f32 %v598, %v597
    %v600 = vmul.f32 0.5, %v599
    %v601 = vsub.f32 1.5, %v600
    %v602 = vmul.f32 %v597, %v601
    %v603 = vmul.f32 %v449, %v602
    %vm604 = vcmp.eq.f32.partialorder %v449, inf
    %v605 = vsel %vm604, %v449, %v603
    %vm606 = vcmp.eq.f32.partialorder %v449, 0.0
    %v607 = vand.u32 %v449, 2147483648
    %v608 = vsel %vm606, %v607, %v605
    %v609 = vrsqrt.pop %v450
    %v610 = vmul.f32 %v609, %v450
    %v611 = vmul.f32 %v610, %v609
    %v612 = vmul.f32 0.5, %v611
    %v613 = vsub.f32 1.5, %v612
    %v614 = vmul.f32 %v609, %v613
    %v615 = vmul.f32 %v450, %v614
    %vm616 = vcmp.eq.f32.partialorder %v450, inf
    %v617 = vsel %vm616, %v450, %v615
    %vm618 = vcmp.eq.f32.partialorder %v450, 0.0
    %v619 = vand.u32 %v450, 2147483648
    %v620 = vsel %vm618, %v619, %v617
    %v621 = vrsqrt.pop %v451
    %v622 = vmul.f32 %v621, %v451
    %v623 = vmul.f32 %v622, %v621
    %v624 = vmul.f32 0.5, %v623
    %v625 = vsub.f32 1.5, %v624
    %v626 = vmul.f32 %v621, %v625
    %v627 = vmul.f32 %v451, %v626
    %vm628 = vcmp.eq.f32.partialorder %v451, inf
    %v629 = vsel %vm628, %v451, %v627
    %vm630 = vcmp.eq.f32.partialorder %v451, 0.0
    %v631 = vand.u32 %v451, 2147483648
    %v632 = vsel %vm630, %v631, %v629
    %v633 = vrsqrt.pop %v452
    %v634 = vmul.f32 %v633, %v452
    %v635 = vmul.f32 %v634, %v633
    %v636 = vmul.f32 0.5, %v635
    %v637 = vsub.f32 1.5, %v636
    %v638 = vmul.f32 %v633, %v637
    %v639 = vmul.f32 %v452, %v638
    %vm640 = vcmp.eq.f32.partialorder %v452, inf
    %v641 = vsel %vm640, %v452, %v639
    %vm642 = vcmp.eq.f32.partialorder %v452, 0.0
    %v643 = vand.u32 %v452, 2147483648
    %v644 = vsel %vm642, %v643, %v641
    %v645 = vmul.f32 %v464, -0.007784894
    %v646 = vmul.f32 %v476, -0.007784894
    %v647 = vmul.f32 %v488, -0.007784894
    %v648 = vmul.f32 %v500, -0.007784894
    %v649 = vmul.f32 %v512, -0.007784894
    %v650 = vmul.f32 %v524, -0.007784894
    %v651 = vmul.f32 %v536, -0.007784894
    %v652 = vmul.f32 %v548, -0.007784894
    %v653 = vmul.f32 %v560, -0.007784894
    %v654 = vmul.f32 %v572, -0.007784894
    %v655 = vmul.f32 %v584, -0.007784894
    %v656 = vmul.f32 %v596, -0.007784894
    %v657 = vmul.f32 %v608, -0.007784894
    %v658 = vmul.f32 %v620, -0.007784894
    %v659 = vmul.f32 %v632, -0.007784894
    %v660 = vmul.f32 %v644, -0.007784894
    %v661 = vadd.f32 %v645, -0.32239646
    %v662 = vadd.f32 %v646, -0.32239646
    %v663 = vadd.f32 %v647, -0.32239646
    %v664 = vadd.f32 %v648, -0.32239646
    %v665 = vadd.f32 %v649, -0.32239646
    %v666 = vadd.f32 %v650, -0.32239646
    %v667 = vadd.f32 %v651, -0.32239646
    %v668 = vadd.f32 %v652, -0.32239646
    %v669 = vadd.f32 %v653, -0.32239646
    %v670 = vadd.f32 %v654, -0.32239646
    %v671 = vadd.f32 %v655, -0.32239646
    %v672 = vadd.f32 %v656, -0.32239646
    %v673 = vadd.f32 %v657, -0.32239646
    %v674 = vadd.f32 %v658, -0.32239646
    %v675 = vadd.f32 %v659, -0.32239646
    %v676 = vadd.f32 %v660, -0.32239646
    %v677 = vmul.f32 %v661, %v464
    %v678 = vmul.f32 %v662, %v476
    %v679 = vmul.f32 %v663, %v488
    %v680 = vmul.f32 %v664, %v500
    %v681 = vmul.f32 %v665, %v512
    %v682 = vmul.f32 %v666, %v524
    %v683 = vmul.f32 %v667, %v536
    %v684 = vmul.f32 %v668, %v548
    %v685 = vmul.f32 %v669, %v560
    %v686 = vmul.f32 %v670, %v572
    %v687 = vmul.f32 %v671, %v584
    %v688 = vmul.f32 %v672, %v596
    %v689 = vmul.f32 %v673, %v608
    %v690 = vmul.f32 %v674, %v620
    %v691 = vmul.f32 %v675, %v632
    %v692 = vmul.f32 %v676, %v644
    %v693 = vadd.f32 %v677, -2.4007583
    %v694 = vadd.f32 %v678, -2.4007583
    %v695 = vadd.f32 %v679, -2.4007583
    %v696 = vadd.f32 %v680, -2.4007583
    %v697 = vadd.f32 %v681, -2.4007583
    %v698 = vadd.f32 %v682, -2.4007583
    %v699 = vadd.f32 %v683, -2.4007583
    %v700 = vadd.f32 %v684, -2.4007583
    %v701 = vadd.f32 %v685, -2.4007583
    %v702 = vadd.f32 %v686, -2.4007583
    %v703 = vadd.f32 %v687, -2.4007583
    %v704 = vadd.f32 %v688, -2.4007583
    %v705 = vadd.f32 %v689, -2.4007583
    %v706 = vadd.f32 %v690, -2.4007583
    %v707 = vadd.f32 %v691, -2.4007583
    %v708 = vadd.f32 %v692, -2.4007583
    %v709 = vmul.f32 %v693, %v464
    %v710 = vmul.f32 %v694, %v476
    %v711 = vmul.f32 %v695, %v488
    %v712 = vmul.f32 %v696, %v500
    %v713 = vmul.f32 %v697, %v512
    %v714 = vmul.f32 %v698, %v524
    %v715 = vmul.f32 %v699, %v536
    %v716 = vmul.f32 %v700, %v548
    %v717 = vmul.f32 %v701, %v560
    %v718 = vmul.f32 %v702, %v572
    %v719 = vmul.f32 %v703, %v584
    %v720 = vmul.f32 %v704, %v596
    %v721 = vmul.f32 %v705, %v608
    %v722 = vmul.f32 %v706, %v620
    %v723 = vmul.f32 %v707, %v632
    %v724 = vmul.f32 %v708, %v644
    %v725 = vadd.f32 %v709, -2.5497324
    %v726 = vadd.f32 %v710, -2.5497324
    %v727 = vadd.f32 %v711, -2.5497324
    %v728 = vadd.f32 %v712, -2.5497324
    %v729 = vadd.f32 %v713, -2.5497324
    %v730 = vadd.f32 %v714, -2.5497324
    %v731 = vadd.f32 %v715, -2.5497324
    %v732 = vadd.f32 %v716, -2.5497324
    %v733 = vadd.f32 %v717, -2.5497324
    %v734 = vadd.f32 %v718, -2.5497324
    %v735 = vadd.f32 %v719, -2.5497324
    %v736 = vadd.f32 %v720, -2.5497324
    %v737 = vadd.f32 %v721, -2.5497324
    %v738 = vadd.f32 %v722, -2.5497324
    %v739 = vadd.f32 %v723, -2.5497324
    %v740 = vadd.f32 %v724, -2.5497324
    %v741 = vmul.f32 %v725, %v464
    %v742 = vmul.f32 %v726, %v476
    %v743 = vmul.f32 %v727, %v488
    %v744 = vmul.f32 %v728, %v500
    %v745 = vmul.f32 %v729, %v512
    %v746 = vmul.f32 %v730, %v524
    %v747 = vmul.f32 %v731, %v536
    %v748 = vmul.f32 %v732, %v548
    %v749 = vmul.f32 %v733, %v560
    %v750 = vmul.f32 %v734, %v572
    %v751 = vmul.f32 %v735, %v584
    %v752 = vmul.f32 %v736, %v596
    %v753 = vmul.f32 %v737, %v608
    %v754 = vmul.f32 %v738, %v620
    %v755 = vmul.f32 %v739, %v632
    %v756 = vmul.f32 %v740, %v644
    %v757 = vadd.f32 %v741, 4.3746643
    %v758 = vadd.f32 %v742, 4.3746643
    %v759 = vadd.f32 %v743, 4.3746643
    %v760 = vadd.f32 %v744, 4.3746643
    %v761 = vadd.f32 %v745, 4.3746643
    %v762 = vadd.f32 %v746, 4.3746643
    %v763 = vadd.f32 %v747, 4.3746643
    %v764 = vadd.f32 %v748, 4.3746643
    %v765 = vadd.f32 %v749, 4.3746643
    %v766 = vadd.f32 %v750, 4.3746643
    %v767 = vadd.f32 %v751, 4.3746643
    %v768 = vadd.f32 %v752, 4.3746643
    %v769 = vadd.f32 %v753, 4.3746643
    %v770 = vadd.f32 %v754, 4.3746643
    %v771 = vadd.f32 %v755, 4.3746643
    %v772 = vadd.f32 %v756, 4.3746643
    %v773 = vmul.f32 %v757, %v464
    %v774 = vmul.f32 %v758, %v476
    %v775 = vmul.f32 %v759, %v488
    %v776 = vmul.f32 %v760, %v500
    %v777 = vmul.f32 %v761, %v512
    %v778 = vmul.f32 %v762, %v524
    %v779 = vmul.f32 %v763, %v536
    %v780 = vmul.f32 %v764, %v548
    %v781 = vmul.f32 %v765, %v560
    %v782 = vmul.f32 %v766, %v572
    %v783 = vmul.f32 %v767, %v584
    %v784 = vmul.f32 %v768, %v596
    %v785 = vmul.f32 %v769, %v608
    %v786 = vmul.f32 %v770, %v620
    %v787 = vmul.f32 %v771, %v632
    %v788 = vmul.f32 %v772, %v644
    %v789 = vadd.f32 %v773, 2.938164
    %v790 = vadd.f32 %v774, 2.938164
    %v791 = vadd.f32 %v775, 2.938164
    %v792 = vadd.f32 %v776, 2.938164
    %v793 = vadd.f32 %v777, 2.938164
    %v794 = vadd.f32 %v778, 2.938164
    %v795 = vadd.f32 %v779, 2.938164
    %v796 = vadd.f32 %v780, 2.938164
    %v797 = vadd.f32 %v781, 2.938164
    %v798 = vadd.f32 %v782, 2.938164
    %v799 = vadd.f32 %v783, 2.938164
    %v800 = vadd.f32 %v784, 2.938164
    %v801 = vadd.f32 %v785, 2.938164
    %v802 = vadd.f32 %v786, 2.938164
    %v803 = vadd.f32 %v787, 2.938164
    %v804 = vadd.f32 %v788, 2.938164
    %v805 = vmul.f32 %v464, 0.007784696
    %v806 = vmul.f32 %v476, 0.007784696
    %v807 = vmul.f32 %v488, 0.007784696
    %v808 = vmul.f32 %v500, 0.007784696
    %v809 = vmul.f32 %v512, 0.007784696
    %v810 = vmul.f32 %v524, 0.007784696
    %v811 = vmul.f32 %v536, 0.007784696
    %v812 = vmul.f32 %v548, 0.007784696
    %v813 = vmul.f32 %v560, 0.007784696
    %v814 = vmul.f32 %v572, 0.007784696
    %v815 = vmul.f32 %v584, 0.007784696
    %v816 = vmul.f32 %v596, 0.007784696
    %v817 = vmul.f32 %v608, 0.007784696
    %v818 = vmul.f32 %v620, 0.007784696
    %v819 = vmul.f32 %v632, 0.007784696
    %v820 = vmul.f32 %v644, 0.007784696
    %v821 = vadd.f32 %v805, 0.32246712
    %v822 = vadd.f32 %v806, 0.32246712
    %v823 = vadd.f32 %v807, 0.32246712
    %v824 = vadd.f32 %v808, 0.32246712
    %v825 = vadd.f32 %v809, 0.32246712
    %v826 = vadd.f32 %v810, 0.32246712
    %v827 = vadd.f32 %v811, 0.32246712
    %v828 = vadd.f32 %v812, 0.32246712
    %v829 = vadd.f32 %v813, 0.32246712
    %v830 = vadd.f32 %v814, 0.32246712
    %v831 = vadd.f32 %v815, 0.32246712
    %v832 = vadd.f32 %v816, 0.32246712
    %v833 = vadd.f32 %v817, 0.32246712
    %v834 = vadd.f32 %v818, 0.32246712
    %v835 = vadd.f32 %v819, 0.32246712
    %v836 = vadd.f32 %v820, 0.32246712
    %v837 = vmul.f32 %v821, %v464
    %v838 = vmul.f32 %v822, %v476
    %v839 = vmul.f32 %v823, %v488
    %v840 = vmul.f32 %v824, %v500
    %v841 = vmul.f32 %v825, %v512
    %v842 = vmul.f32 %v826, %v524
    %v843 = vmul.f32 %v827, %v536
    %v844 = vmul.f32 %v828, %v548
    %v845 = vmul.f32 %v829, %v560
    %v846 = vmul.f32 %v830, %v572
    %v847 = vmul.f32 %v831, %v584
    %v848 = vmul.f32 %v832, %v596
    %v849 = vmul.f32 %v833, %v608
    %v850 = vmul.f32 %v834, %v620
    %v851 = vmul.f32 %v835, %v632
    %v852 = vmul.f32 %v836, %v644
    %v853 = vadd.f32 %v837, 2.4451342
    %v854 = vadd.f32 %v838, 2.4451342
    %v855 = vadd.f32 %v839, 2.4451342
    %v856 = vadd.f32 %v840, 2.4451342
    %v857 = vadd.f32 %v841, 2.4451342
    %v858 = vadd.f32 %v842, 2.4451342
    %v859 = vadd.f32 %v843, 2.4451342
    %v860 = vadd.f32 %v844, 2.4451342
    %v861 = vadd.f32 %v845, 2.4451342
    %v862 = vadd.f32 %v846, 2.4451342
    %v863 = vadd.f32 %v847, 2.4451342
    %v864 = vadd.f32 %v848, 2.4451342
    %v865 = vadd.f32 %v849, 2.4451342
    %v866 = vadd.f32 %v850, 2.4451342
    %v867 = vadd.f32 %v851, 2.4451342
    %v868 = vadd.f32 %v852, 2.4451342
    %v869 = vmul.f32 %v853, %v464
    %v870 = vmul.f32 %v854, %v476
    %v871 = vmul.f32 %v855, %v488
    %v872 = vmul.f32 %v856, %v500
    %v873 = vmul.f32 %v857, %v512
    %v874 = vmul.f32 %v858, %v524
    %v875 = vmul.f32 %v859, %v536
    %v876 = vmul.f32 %v860, %v548
    %v877 = vmul.f32 %v861, %v560
    %v878 = vmul.f32 %v862, %v572
    %v879 = vmul.f32 %v863, %v584
    %v880 = vmul.f32 %v864, %v596
    %v881 = vmul.f32 %v865, %v608
    %v882 = vmul.f32 %v866, %v620
    %v883 = vmul.f32 %v867, %v632
    %v884 = vmul.f32 %v868, %v644
    %v885 = vadd.f32 %v869, 3.7544086
    %v886 = vadd.f32 %v870, 3.7544086
    %v887 = vadd.f32 %v871, 3.7544086
    %v888 = vadd.f32 %v872, 3.7544086
    %v889 = vadd.f32 %v873, 3.7544086
    %v890 = vadd.f32 %v874, 3.7544086
    %v891 = vadd.f32 %v875, 3.7544086
    %v892 = vadd.f32 %v876, 3.7544086
    %v893 = vadd.f32 %v877, 3.7544086
    %v894 = vadd.f32 %v878, 3.7544086
    %v895 = vadd.f32 %v879, 3.7544086
    %v896 = vadd.f32 %v880, 3.7544086
    %v897 = vadd.f32 %v881, 3.7544086
    %v898 = vadd.f32 %v882, 3.7544086
    %v899 = vadd.f32 %v883, 3.7544086
    %v900 = vadd.f32 %v884, 3.7544086
    %v901 = vmul.f32 %v885, %v464
    %v902 = vmul.f32 %v886, %v476
    %v903 = vmul.f32 %v887, %v488
    %v904 = vmul.f32 %v888, %v500
    %v905 = vmul.f32 %v889, %v512
    %v906 = vmul.f32 %v890, %v524
    %v907 = vmul.f32 %v891, %v536
    %v908 = vmul.f32 %v892, %v548
    %v909 = vmul.f32 %v893, %v560
    %v910 = vmul.f32 %v894, %v572
    %v911 = vmul.f32 %v895, %v584
    %v912 = vmul.f32 %v896, %v596
    %v913 = vmul.f32 %v897, %v608
    %v914 = vmul.f32 %v898, %v620
    %v915 = vmul.f32 %v899, %v632
    %v916 = vmul.f32 %v900, %v644
    %v917 = vadd.f32 %v901, 1.0
    %v918 = vadd.f32 %v902, 1.0
    %v919 = vadd.f32 %v903, 1.0
    %v920 = vadd.f32 %v904, 1.0
    %v921 = vadd.f32 %v905, 1.0
    %v922 = vadd.f32 %v906, 1.0
    %v923 = vadd.f32 %v907, 1.0
    %v924 = vadd.f32 %v908, 1.0
    %v925 = vadd.f32 %v909, 1.0
    %v926 = vadd.f32 %v910, 1.0
    %v927 = vadd.f32 %v911, 1.0
    %v928 = vadd.f32 %v912, 1.0
    %v929 = vadd.f32 %v913, 1.0
    %v930 = vadd.f32 %v914, 1.0
    %v931 = vadd.f32 %v915, 1.0
    %v932 = vadd.f32 %v916, 1.0
    %v933 = vrcp.pop %v917
    %v934 = vmul.f32 %v917, %v933
    %v935 = vsub.f32 1.0, %v934
    %v936 = vmul.f32 %v933, %v935
    %v937 = vadd.f32 %v933, %v936
    %vm938 = vweird.f32 %v917
    %vm939 = vweird.f32 %v933
    %vm940 = vmor %vm938, %vm939
    %v941 = vsel %vm940, %v933, %v937
    %v942 = vand.u32 2147483647, %v917
    %vm943 = vcmp.eq.f32.partialorder %v942, 8.507059e+37
    %v944 = vand.u32 %v917, 2147483648
    %v945 = vor.u32 1.1754944e-38, %v944
    %v946 = vsel %vm943, %v945, %v941
    %v947 = vmul.f32 %v789, %v946
    %v948 = vrcp.pop %v918
    %v949 = vmul.f32 %v918, %v948
    %v950 = vsub.f32 1.0, %v949
    %v951 = vmul.f32 %v948, %v950
    %v952 = vadd.f32 %v948, %v951
    %vm953 = vweird.f32 %v918
    %vm954 = vweird.f32 %v948
    %vm955 = vmor %vm953, %vm954
    %v956 = vsel %vm955, %v948, %v952
    %v957 = vand.u32 2147483647, %v918
    %vm958 = vcmp.eq.f32.partialorder %v957, 8.507059e+37
    %v959 = vand.u32 %v918, 2147483648
    %v960 = vor.u32 1.1754944e-38, %v959
    %v961 = vsel %vm958, %v960, %v956
    %v962 = vmul.f32 %v790, %v961
    %v963 = vrcp.pop %v919
    %v964 = vmul.f32 %v919, %v963
    %v965 = vsub.f32 1.0, %v964
    %v966 = vmul.f32 %v963, %v965
    %v967 = vadd.f32 %v963, %v966
    %vm968 = vweird.f32 %v919
    %vm969 = vweird.f32 %v963
    %vm970 = vmor %vm968, %vm969
    %v971 = vsel %vm970, %v963, %v967
    %v972 = vand.u32 2147483647, %v919
    %vm973 = vcmp.eq.f32.partialorder %v972, 8.507059e+37
    %v974 = vand.u32 %v919, 2147483648
    %v975 = vor.u32 1.1754944e-38, %v974
    %v976 = vsel %vm973, %v975, %v971
    %v977 = vmul.f32 %v791, %v976
    %v978 = vrcp.pop %v920
    %v979 = vmul.f32 %v920, %v978
    %v980 = vsub.f32 1.0, %v979
    %v981 = vmul.f32 %v978, %v980
    %v982 = vadd.f32 %v978, %v981
    %vm983 = vweird.f32 %v920
    %vm984 = vweird.f32 %v978
    %vm985 = vmor %vm983, %vm984
    %v986 = vsel %vm985, %v978, %v982
    %v987 = vand.u32 2147483647, %v920
    %vm988 = vcmp.eq.f32.partialorder %v987, 8.507059e+37
    %v989 = vand.u32 %v920, 2147483648
    %v990 = vor.u32 1.1754944e-38, %v989
    %v991 = vsel %vm988, %v990, %v986
    %v992 = vmul.f32 %v792, %v991
    %v993 = vrcp.pop %v921
    %v994 = vmul.f32 %v921, %v993
    %v995 = vsub.f32 1.0, %v994
    %v996 = vmul.f32 %v993, %v995
    %v997 = vadd.f32 %v993, %v996
    %vm998 = vweird.f32 %v921
    %vm999 = vweird.f32 %v993
    %vm1000 = vmor %vm998, %vm999
    %v1001 = vsel %vm1000, %v993, %v997
    %v1002 = vand.u32 2147483647, %v921
    %vm1003 = vcmp.eq.f32.partialorder %v1002, 8.507059e+37
    %v1004 = vand.u32 %v921, 2147483648
    %v1005 = vor.u32 1.1754944e-38, %v1004
    %v1006 = vsel %vm1003, %v1005, %v1001
    %v1007 = vmul.f32 %v793, %v1006
    %v1008 = vrcp.pop %v922
    %v1009 = vmul.f32 %v922, %v1008
    %v1010 = vsub.f32 1.0, %v1009
    %v1011 = vmul.f32 %v1008, %v1010
    %v1012 = vadd.f32 %v1008, %v1011
    %vm1013 = vweird.f32 %v922
    %vm1014 = vweird.f32 %v1008
    %vm1015 = vmor %vm1013, %vm1014
    %v1016 = vsel %vm1015, %v1008, %v1012
    %v1017 = vand.u32 2147483647, %v922
    %vm1018 = vcmp.eq.f32.partialorder %v1017, 8.507059e+37
    %v1019 = vand.u32 %v922, 2147483648
    %v1020 = vor.u32 1.1754944e-38, %v1019
    %v1021 = vsel %vm1018, %v1020, %v1016
    %v1022 = vmul.f32 %v794, %v1021
    %v1023 = vrcp.pop %v923
    %v1024 = vmul.f32 %v923, %v1023
    %v1025 = vsub.f32 1.0, %v1024
    %v1026 = vmul.f32 %v1023, %v1025
    %v1027 = vadd.f32 %v1023, %v1026
    %vm1028 = vweird.f32 %v923
    %vm1029 = vweird.f32 %v1023
    %vm1030 = vmor %vm1028, %vm1029
    %v1031 = vsel %vm1030, %v1023, %v1027
    %v1032 = vand.u32 2147483647, %v923
    %vm1033 = vcmp.eq.f32.partialorder %v1032, 8.507059e+37
    %v1034 = vand.u32 %v923, 2147483648
    %v1035 = vor.u32 1.1754944e-38, %v1034
    %v1036 = vsel %vm1033, %v1035, %v1031
    %v1037 = vmul.f32 %v795, %v1036
    %v1038 = vrcp.pop %v924
    %v1039 = vmul.f32 %v924, %v1038
    %v1040 = vsub.f32 1.0, %v1039
    %v1041 = vmul.f32 %v1038, %v1040
    %v1042 = vadd.f32 %v1038, %v1041
    %vm1043 = vweird.f32 %v924
    %vm1044 = vweird.f32 %v1038
    %vm1045 = vmor %vm1043, %vm1044
    %v1046 = vsel %vm1045, %v1038, %v1042
    %v1047 = vand.u32 2147483647, %v924
    %vm1048 = vcmp.eq.f32.partialorder %v1047, 8.507059e+37
    %v1049 = vand.u32 %v924, 2147483648
    %v1050 = vor.u32 1.1754944e-38, %v1049
    %v1051 = vsel %vm1048, %v1050, %v1046
    %v1052 = vmul.f32 %v796, %v1051
    %v1053 = vrcp.pop %v925
    %v1054 = vmul.f32 %v925, %v1053
    %v1055 = vsub.f32 1.0, %v1054
    %v1056 = vmul.f32 %v1053, %v1055
    %v1057 = vadd.f32 %v1053, %v1056
    %vm1058 = vweird.f32 %v925
    %vm1059 = vweird.f32 %v1053
    %vm1060 = vmor %vm1058, %vm1059
    %v1061 = vsel %vm1060, %v1053, %v1057
    %v1062 = vand.u32 2147483647, %v925
    %vm1063 = vcmp.eq.f32.partialorder %v1062, 8.507059e+37
    %v1064 = vand.u32 %v925, 2147483648
    %v1065 = vor.u32 1.1754944e-38, %v1064
    %v1066 = vsel %vm1063, %v1065, %v1061
    %v1067 = vmul.f32 %v797, %v1066
    %v1068 = vrcp.pop %v926
    %v1069 = vmul.f32 %v926, %v1068
    %v1070 = vsub.f32 1.0, %v1069
    %v1071 = vmul.f32 %v1068, %v1070
    %v1072 = vadd.f32 %v1068, %v1071
    %vm1073 = vweird.f32 %v926
    %vm1074 = vweird.f32 %v1068
    %vm1075 = vmor %vm1073, %vm1074
    %v1076 = vsel %vm1075, %v1068, %v1072
    %v1077 = vand.u32 2147483647, %v926
    %vm1078 = vcmp.eq.f32.partialorder %v1077, 8.507059e+37
    %v1079 = vand.u32 %v926, 2147483648
    %v1080 = vor.u32 1.1754944e-38, %v1079
    %v1081 = vsel %vm1078, %v1080, %v1076
    %v1082 = vmul.f32 %v798, %v1081
    %v1083 = vrcp.pop %v927
    %v1084 = vmul.f32 %v927, %v1083
    %v1085 = vsub.f32 1.0, %v1084
    %v1086 = vmul.f32 %v1083, %v1085
    %v1087 = vadd.f32 %v1083, %v1086
    %vm1088 = vweird.f32 %v927
    %vm1089 = vweird.f32 %v1083
    %vm1090 = vmor %vm1088, %vm1089
    %v1091 = vsel %vm1090, %v1083, %v1087
    %v1092 = vand.u32 2147483647, %v927
    %vm1093 = vcmp.eq.f32.partialorder %v1092, 8.507059e+37
    %v1094 = vand.u32 %v927, 2147483648
    %v1095 = vor.u32 1.1754944e-38, %v1094
    %v1096 = vsel %vm1093, %v1095, %v1091
    %v1097 = vmul.f32 %v799, %v1096
    %v1098 = vrcp.pop %v928
    %v1099 = vmul.f32 %v928, %v1098
    %v1100 = vsub.f32 1.0, %v1099
    %v1101 = vmul.f32 %v1098, %v1100
    %v1102 = vadd.f32 %v1098, %v1101
    %vm1103 = vweird.f32 %v928
    %vm1104 = vweird.f32 %v1098
    %vm1105 = vmor %vm1103, %vm1104
    %v1106 = vsel %vm1105, %v1098, %v1102
    %v1107 = vand.u32 2147483647, %v928
    %vm1108 = vcmp.eq.f32.partialorder %v1107, 8.507059e+37
    %v1109 = vand.u32 %v928, 2147483648
    %v1110 = vor.u32 1.1754944e-38, %v1109
    %v1111 = vsel %vm1108, %v1110, %v1106
    %v1112 = vmul.f32 %v800, %v1111
    %v1113 = vrcp.pop %v929
    %v1114 = vmul.f32 %v929, %v1113
    %v1115 = vsub.f32 1.0, %v1114
    %v1116 = vmul.f32 %v1113, %v1115
    %v1117 = vadd.f32 %v1113, %v1116
    %vm1118 = vweird.f32 %v929
    %vm1119 = vweird.f32 %v1113
    %vm1120 = vmor %vm1118, %vm1119
    %v1121 = vsel %vm1120, %v1113, %v1117
    %v1122 = vand.u32 2147483647, %v929
    %vm1123 = vcmp.eq.f32.partialorder %v1122, 8.507059e+37
    %v1124 = vand.u32 %v929, 2147483648
    %v1125 = vor.u32 1.1754944e-38, %v1124
    %v1126 = vsel %vm1123, %v1125, %v1121
    %v1127 = vmul.f32 %v801, %v1126
    %v1128 = vrcp.pop %v930
    %v1129 = vmul.f32 %v930, %v1128
    %v1130 = vsub.f32 1.0, %v1129
    %v1131 = vmul.f32 %v1128, %v1130
    %v1132 = vadd.f32 %v1128, %v1131
    %vm1133 = vweird.f32 %v930
    %vm1134 = vweird.f32 %v1128
    %vm1135 = vmor %vm1133, %vm1134
    %v1136 = vsel %vm1135, %v1128, %v1132
    %v1137 = vand.u32 2147483647, %v930
    %vm1138 = vcmp.eq.f32.partialorder %v1137, 8.507059e+37
    %v1139 = vand.u32 %v930, 2147483648
    %v1140 = vor.u32 1.1754944e-38, %v1139
    %v1141 = vsel %vm1138, %v1140, %v1136
    %v1142 = vmul.f32 %v802, %v1141
    %v1143 = vrcp.pop %v931
    %v1144 = vmul.f32 %v931, %v1143
    %v1145 = vsub.f32 1.0, %v1144
    %v1146 = vmul.f32 %v1143, %v1145
    %v1147 = vadd.f32 %v1143, %v1146
    %vm1148 = vweird.f32 %v931
    %vm1149 = vweird.f32 %v1143
    %vm1150 = vmor %vm1148, %vm1149
    %v1151 = vsel %vm1150, %v1143, %v1147
    %v1152 = vand.u32 2147483647, %v931
    %vm1153 = vcmp.eq.f32.partialorder %v1152, 8.507059e+37
    %v1154 = vand.u32 %v931, 2147483648
    %v1155 = vor.u32 1.1754944e-38, %v1154
    %v1156 = vsel %vm1153, %v1155, %v1151
    %v1157 = vmul.f32 %v803, %v1156
    %v1158 = vrcp.pop %v932
    %v1159 = vmul.f32 %v932, %v1158
    %v1160 = vsub.f32 1.0, %v1159
    %v1161 = vmul.f32 %v1158, %v1160
    %v1162 = vadd.f32 %v1158, %v1161
    %vm1163 = vweird.f32 %v932
    %vm1164 = vweird.f32 %v1158
    %vm1165 = vmor %vm1163, %vm1164
    %v1166 = vsel %vm1165, %v1158, %v1162
    %v1167 = vand.u32 2147483647, %v932
    %vm1168 = vcmp.eq.f32.partialorder %v1167, 8.507059e+37
    %v1169 = vand.u32 %v932, 2147483648
    %v1170 = vor.u32 1.1754944e-38, %v1169
    %v1171 = vsel %vm1168, %v1170, %v1166
    %v1172 = vmul.f32 %v804, %v1171
    %v1173 = vmax.f32 %v389, 0.02425
    %v1174 = vmax.f32 %v390, 0.02425
    %v1175 = vmax.f32 %v391, 0.02425
    %v1176 = vmax.f32 %v392, 0.02425
    %v1177 = vmax.f32 %v393, 0.02425
    %v1178 = vmax.f32 %v394, 0.02425
    %v1179 = vmax.f32 %v395, 0.02425
    %v1180 = vmax.f32 %v396, 0.02425
    %v1181 = vmax.f32 %v397, 0.02425
    %v1182 = vmax.f32 %v398, 0.02425
    %v1183 = vmax.f32 %v399, 0.02425
    %v1184 = vmax.f32 %v400, 0.02425
    %v1185 = vmax.f32 %v401, 0.02425
    %v1186 = vmax.f32 %v402, 0.02425
    %v1187 = vmax.f32 %v403, 0.02425
    %v1188 = vmax.f32 %v404, 0.02425
    %v1189 = vsub.f32 %v1173, 0.5
    %v1190 = vsub.f32 %v1174, 0.5
    %v1191 = vsub.f32 %v1175, 0.5
    %v1192 = vsub.f32 %v1176, 0.5
    %v1193 = vsub.f32 %v1177, 0.5
    %v1194 = vsub.f32 %v1178, 0.5
    %v1195 = vsub.f32 %v1179, 0.5
    %v1196 = vsub.f32 %v1180, 0.5
    %v1197 = vsub.f32 %v1181, 0.5
    %v1198 = vsub.f32 %v1182, 0.5
    %v1199 = vsub.f32 %v1183, 0.5
    %v1200 = vsub.f32 %v1184, 0.5
    %v1201 = vsub.f32 %v1185, 0.5
    %v1202 = vsub.f32 %v1186, 0.5
    %v1203 = vsub.f32 %v1187, 0.5
    %v1204 = vsub.f32 %v1188, 0.5
    %v1205 = vmul.f32 %v1189, %v1189
    %v1206 = vmul.f32 %v1190, %v1190
    %v1207 = vmul.f32 %v1191, %v1191
    %v1208 = vmul.f32 %v1192, %v1192
    %v1209 = vmul.f32 %v1193, %v1193
    %v1210 = vmul.f32 %v1194, %v1194
    %v1211 = vmul.f32 %v1195, %v1195
    %v1212 = vmul.f32 %v1196, %v1196
    %v1213 = vmul.f32 %v1197, %v1197
    %v1214 = vmul.f32 %v1198, %v1198
    %v1215 = vmul.f32 %v1199, %v1199
    %v1216 = vmul.f32 %v1200, %v1200
    %v1217 = vmul.f32 %v1201, %v1201
    %v1218 = vmul.f32 %v1202, %v1202
    %v1219 = vmul.f32 %v1203, %v1203
    %v1220 = vmul.f32 %v1204, %v1204
    %v1221 = vmul.f32 %v1205, -39.69683
    %v1222 = vmul.f32 %v1206, -39.69683
    %v1223 = vmul.f32 %v1207, -39.69683
    %v1224 = vmul.f32 %v1208, -39.69683
    %v1225 = vmul.f32 %v1209, -39.69683
    %v1226 = vmul.f32 %v1210, -39.69683
    %v1227 = vmul.f32 %v1211, -39.69683
    %v1228 = vmul.f32 %v1212, -39.69683
    %v1229 = vmul.f32 %v1213, -39.69683
    %v1230 = vmul.f32 %v1214, -39.69683
    %v1231 = vmul.f32 %v1215, -39.69683
    %v1232 = vmul.f32 %v1216, -39.69683
    %v1233 = vmul.f32 %v1217, -39.69683
    %v1234 = vmul.f32 %v1218, -39.69683
    %v1235 = vmul.f32 %v1219, -39.69683
    %v1236 = vmul.f32 %v1220, -39.69683
    %v1237 = vadd.f32 %v1221, 220.9461
    %v1238 = vadd.f32 %v1222, 220.9461
    %v1239 = vadd.f32 %v1223, 220.9461
    %v1240 = vadd.f32 %v1224, 220.9461
    %v1241 = vadd.f32 %v1225, 220.9461
    %v1242 = vadd.f32 %v1226, 220.9461
    %v1243 = vadd.f32 %v1227, 220.9461
    %v1244 = vadd.f32 %v1228, 220.9461
    %v1245 = vadd.f32 %v1229, 220.9461
    %v1246 = vadd.f32 %v1230, 220.9461
    %v1247 = vadd.f32 %v1231, 220.9461
    %v1248 = vadd.f32 %v1232, 220.9461
    %v1249 = vadd.f32 %v1233, 220.9461
    %v1250 = vadd.f32 %v1234, 220.9461
    %v1251 = vadd.f32 %v1235, 220.9461
    %v1252 = vadd.f32 %v1236, 220.9461
    %v1253 = vmul.f32 %v1237, %v1205
    %v1254 = vmul.f32 %v1238, %v1206
    %v1255 = vmul.f32 %v1239, %v1207
    %v1256 = vmul.f32 %v1240, %v1208
    %v1257 = vmul.f32 %v1241, %v1209
    %v1258 = vmul.f32 %v1242, %v1210
    %v1259 = vmul.f32 %v1243, %v1211
    %v1260 = vmul.f32 %v1244, %v1212
    %v1261 = vmul.f32 %v1245, %v1213
    %v1262 = vmul.f32 %v1246, %v1214
    %v1263 = vmul.f32 %v1247, %v1215
    %v1264 = vmul.f32 %v1248, %v1216
    %v1265 = vmul.f32 %v1249, %v1217
    %v1266 = vmul.f32 %v1250, %v1218
    %v1267 = vmul.f32 %v1251, %v1219
    %v1268 = vmul.f32 %v1252, %v1220
    %v1269 = vadd.f32 %v1253, -275.9285
    %v1270 = vadd.f32 %v1254, -275.9285
    %v1271 = vadd.f32 %v1255, -275.9285
    %v1272 = vadd.f32 %v1256, -275.9285
    %v1273 = vadd.f32 %v1257, -275.9285
    %v1274 = vadd.f32 %v1258, -275.9285
    %v1275 = vadd.f32 %v1259, -275.9285
    %v1276 = vadd.f32 %v1260, -275.9285
    %v1277 = vadd.f32 %v1261, -275.9285
    %v1278 = vadd.f32 %v1262, -275.9285
    %v1279 = vadd.f32 %v1263, -275.9285
    %v1280 = vadd.f32 %v1264, -275.9285
    %v1281 = vadd.f32 %v1265, -275.9285
    %v1282 = vadd.f32 %v1266, -275.9285
    %v1283 = vadd.f32 %v1267, -275.9285
    %v1284 = vadd.f32 %v1268, -275.9285
    %v1285 = vmul.f32 %v1269, %v1205
    %v1286 = vmul.f32 %v1270, %v1206
    %v1287 = vmul.f32 %v1271, %v1207
    %v1288 = vmul.f32 %v1272, %v1208
    %v1289 = vmul.f32 %v1273, %v1209
    %v1290 = vmul.f32 %v1274, %v1210
    %v1291 = vmul.f32 %v1275, %v1211
    %v1292 = vmul.f32 %v1276, %v1212
    %v1293 = vmul.f32 %v1277, %v1213
    %v1294 = vmul.f32 %v1278, %v1214
    %v1295 = vmul.f32 %v1279, %v1215
    %v1296 = vmul.f32 %v1280, %v1216
    %v1297 = vmul.f32 %v1281, %v1217
    %v1298 = vmul.f32 %v1282, %v1218
    %v1299 = vmul.f32 %v1283, %v1219
    %v1300 = vmul.f32 %v1284, %v1220
    %v1301 = vadd.f32 %v1285, 138.35776
    %v1302 = vadd.f32 %v1286, 138.35776
    %v1303 = vadd.f32 %v1287, 138.35776
    %v1304 = vadd.f32 %v1288, 138.35776
    %v1305 = vadd.f32 %v1289, 138.35776
    %v1306 = vadd.f32 %v1290, 138.35776
    %v1307 = vadd.f32 %v1291, 138.35776
    %v1308 = vadd.f32 %v1292, 138.35776
    %v1309 = vadd.f32 %v1293, 138.35776
    %v1310 = vadd.f32 %v1294, 138.35776
    %v1311 = vadd.f32 %v1295, 138.35776
    %v1312 = vadd.f32 %v1296, 138.35776
    %v1313 = vadd.f32 %v1297, 138.35776
    %v1314 = vadd.f32 %v1298, 138.35776
    %v1315 = vadd.f32 %v1299, 138.35776
    %v1316 = vadd.f32 %v1300, 138.35776
    %v1317 = vmul.f32 %v1301, %v1205
    %v1318 = vmul.f32 %v1302, %v1206
    %v1319 = vmul.f32 %v1303, %v1207
    %v1320 = vmul.f32 %v1304, %v1208
    %v1321 = vmul.f32 %v1305, %v1209
    %v1322 = vmul.f32 %v1306, %v1210
    %v1323 = vmul.f32 %v1307, %v1211
    %v1324 = vmul.f32 %v1308, %v1212
    %v1325 = vmul.f32 %v1309, %v1213
    %v1326 = vmul.f32 %v1310, %v1214
    %v1327 = vmul.f32 %v1311, %v1215
    %v1328 = vmul.f32 %v1312, %v1216
    %v1329 = vmul.f32 %v1313, %v1217
    %v1330 = vmul.f32 %v1314, %v1218
    %v1331 = vmul.f32 %v1315, %v1219
    %v1332 = vmul.f32 %v1316, %v1220
    %v1333 = vadd.f32 %v1317, -30.664799
    %v1334 = vadd.f32 %v1318, -30.664799
    %v1335 = vadd.f32 %v1319, -30.664799
    %v1336 = vadd.f32 %v1320, -30.664799
    %v1337 = vadd.f32 %v1321, -30.664799
    %v1338 = vadd.f32 %v1322, -30.664799
    %v1339 = vadd.f32 %v1323, -30.664799
    %v1340 = vadd.f32 %v1324, -30.664799
    %v1341 = vadd.f32 %v1325, -30.664799
    %v1342 = vadd.f32 %v1326, -30.664799
    %v1343 = vadd.f32 %v1327, -30.664799
    %v1344 = vadd.f32 %v1328, -30.664799
    %v1345 = vadd.f32 %v1329, -30.664799
    %v1346 = vadd.f32 %v1330, -30.664799
    %v1347 = vadd.f32 %v1331, -30.664799
    %v1348 = vadd.f32 %v1332, -30.664799
    %v1349 = vmul.f32 %v1333, %v1205
    %v1350 = vmul.f32 %v1334, %v1206
    %v1351 = vmul.f32 %v1335, %v1207
    %v1352 = vmul.f32 %v1336, %v1208
    %v1353 = vmul.f32 %v1337, %v1209
    %v1354 = vmul.f32 %v1338, %v1210
    %v1355 = vmul.f32 %v1339, %v1211
    %v1356 = vmul.f32 %v1340, %v1212
    %v1357 = vmul.f32 %v1341, %v1213
    %v1358 = vmul.f32 %v1342, %v1214
    %v1359 = vmul.f32 %v1343, %v1215
    %v1360 = vmul.f32 %v1344, %v1216
    %v1361 = vmul.f32 %v1345, %v1217
    %v1362 = vmul.f32 %v1346, %v1218
    %v1363 = vmul.f32 %v1347, %v1219
    %v1364 = vmul.f32 %v1348, %v1220
    %v1365 = vadd.f32 %v1349, 2.5066283
    %v1366 = vadd.f32 %v1350, 2.5066283
    %v1367 = vadd.f32 %v1351, 2.5066283
    %v1368 = vadd.f32 %v1352, 2.5066283
    %v1369 = vadd.f32 %v1353, 2.5066283
    %v1370 = vadd.f32 %v1354, 2.5066283
    %v1371 = vadd.f32 %v1355, 2.5066283
    %v1372 = vadd.f32 %v1356, 2.5066283
    %v1373 = vadd.f32 %v1357, 2.5066283
    %v1374 = vadd.f32 %v1358, 2.5066283
    %v1375 = vadd.f32 %v1359, 2.5066283
    %v1376 = vadd.f32 %v1360, 2.5066283
    %v1377 = vadd.f32 %v1361, 2.5066283
    %v1378 = vadd.f32 %v1362, 2.5066283
    %v1379 = vadd.f32 %v1363, 2.5066283
    %v1380 = vadd.f32 %v1364, 2.5066283
    %v1381 = vmul.f32 %v1365, %v1189
    %v1382 = vmul.f32 %v1366, %v1190
    %v1383 = vmul.f32 %v1367, %v1191
    %v1384 = vmul.f32 %v1368, %v1192
    %v1385 = vmul.f32 %v1369, %v1193
    %v1386 = vmul.f32 %v1370, %v1194
    %v1387 = vmul.f32 %v1371, %v1195
    %v1388 = vmul.f32 %v1372, %v1196
    %v1389 = vmul.f32 %v1373, %v1197
    %v1390 = vmul.f32 %v1374, %v1198
    %v1391 = vmul.f32 %v1375, %v1199
    %v1392 = vmul.f32 %v1376, %v1200
    %v1393 = vmul.f32 %v1377, %v1201
    %v1394 = vmul.f32 %v1378, %v1202
    %v1395 = vmul.f32 %v1379, %v1203
    %v1396 = vmul.f32 %v1380, %v1204
    %v1397 = vmul.f32 %v1205, -54.476097
    %v1398 = vmul.f32 %v1206, -54.476097
    %v1399 = vmul.f32 %v1207, -54.476097
    %v1400 = vmul.f32 %v1208, -54.476097
    %v1401 = vmul.f32 %v1209, -54.476097
    %v1402 = vmul.f32 %v1210, -54.476097
    %v1403 = vmul.f32 %v1211, -54.476097
    %v1404 = vmul.f32 %v1212, -54.476097
    %v1405 = vmul.f32 %v1213, -54.476097
    %v1406 = vmul.f32 %v1214, -54.476097
    %v1407 = vmul.f32 %v1215, -54.476097
    %v1408 = vmul.f32 %v1216, -54.476097
    %v1409 = vmul.f32 %v1217, -54.476097
    %v1410 = vmul.f32 %v1218, -54.476097
    %v1411 = vmul.f32 %v1219, -54.476097
    %v1412 = vmul.f32 %v1220, -54.476097
    %v1413 = vadd.f32 %v1397, 161.58583
    %v1414 = vadd.f32 %v1398, 161.58583
    %v1415 = vadd.f32 %v1399, 161.58583
    %v1416 = vadd.f32 %v1400, 161.58583
    %v1417 = vadd.f32 %v1401, 161.58583
    %v1418 = vadd.f32 %v1402, 161.58583
    %v1419 = vadd.f32 %v1403, 161.58583
    %v1420 = vadd.f32 %v1404, 161.58583
    %v1421 = vadd.f32 %v1405, 161.58583
    %v1422 = vadd.f32 %v1406, 161.58583
    %v1423 = vadd.f32 %v1407, 161.58583
    %v1424 = vadd.f32 %v1408, 161.58583
    %v1425 = vadd.f32 %v1409, 161.58583
    %v1426 = vadd.f32 %v1410, 161.58583
    %v1427 = vadd.f32 %v1411, 161.58583
    %v1428 = vadd.f32 %v1412, 161.58583
    %v1429 = vmul.f32 %v1413, %v1205
    %v1430 = vmul.f32 %v1414, %v1206
    %v1431 = vmul.f32 %v1415, %v1207
    %v1432 = vmul.f32 %v1416, %v1208
    %v1433 = vmul.f32 %v1417, %v1209
    %v1434 = vmul.f32 %v1418, %v1210
    %v1435 = vmul.f32 %v1419, %v1211
    %v1436 = vmul.f32 %v1420, %v1212
    %v1437 = vmul.f32 %v1421, %v1213
    %v1438 = vmul.f32 %v1422, %v1214
    %v1439 = vmul.f32 %v1423, %v1215
    %v1440 = vmul.f32 %v1424, %v1216
    %v1441 = vmul.f32 %v1425, %v1217
    %v1442 = vmul.f32 %v1426, %v1218
    %v1443 = vmul.f32 %v1427, %v1219
    %v1444 = vmul.f32 %v1428, %v1220
    %v1445 = vadd.f32 %v1429, -155.69897
    %v1446 = vadd.f32 %v1430, -155.69897
    %v1447 = vadd.f32 %v1431, -155.69897
    %v1448 = vadd.f32 %v1432, -155.69897
    %v1449 = vadd.f32 %v1433, -155.69897
    %v1450 = vadd.f32 %v1434, -155.69897
    %v1451 = vadd.f32 %v1435, -155.69897
    %v1452 = vadd.f32 %v1436, -155.69897
    %v1453 = vadd.f32 %v1437, -155.69897
    %v1454 = vadd.f32 %v1438, -155.69897
    %v1455 = vadd.f32 %v1439, -155.69897
    %v1456 = vadd.f32 %v1440, -155.69897
    %v1457 = vadd.f32 %v1441, -155.69897
    %v1458 = vadd.f32 %v1442, -155.69897
    %v1459 = vadd.f32 %v1443, -155.69897
    %v1460 = vadd.f32 %v1444, -155.69897
    %v1461 = vmul.f32 %v1445, %v1205
    %v1462 = vmul.f32 %v1446, %v1206
    %v1463 = vmul.f32 %v1447, %v1207
    %v1464 = vmul.f32 %v1448, %v1208
    %v1465 = vmul.f32 %v1449, %v1209
    %v1466 = vmul.f32 %v1450, %v1210
    %v1467 = vmul.f32 %v1451, %v1211
    %v1468 = vmul.f32 %v1452, %v1212
    %v1469 = vmul.f32 %v1453, %v1213
    %v1470 = vmul.f32 %v1454, %v1214
    %v1471 = vmul.f32 %v1455, %v1215
    %v1472 = vmul.f32 %v1456, %v1216
    %v1473 = vmul.f32 %v1457, %v1217
    %v1474 = vmul.f32 %v1458, %v1218
    %v1475 = vmul.f32 %v1459, %v1219
    %v1476 = vmul.f32 %v1460, %v1220
    %v1477 = vadd.f32 %v1461, 66.801315
    %v1478 = vadd.f32 %v1462, 66.801315
    %v1479 = vadd.f32 %v1463, 66.801315
    %v1480 = vadd.f32 %v1464, 66.801315
    %v1481 = vadd.f32 %v1465, 66.801315
    %v1482 = vadd.f32 %v1466, 66.801315
    %v1483 = vadd.f32 %v1467, 66.801315
    %v1484 = vadd.f32 %v1468, 66.801315
    %v1485 = vadd.f32 %v1469, 66.801315
    %v1486 = vadd.f32 %v1470, 66.801315
    %v1487 = vadd.f32 %v1471, 66.801315
    %v1488 = vadd.f32 %v1472, 66.801315
    %v1489 = vadd.f32 %v1473, 66.801315
    %v1490 = vadd.f32 %v1474, 66.801315
    %v1491 = vadd.f32 %v1475, 66.801315
    %v1492 = vadd.f32 %v1476, 66.801315
    %v1493 = vmul.f32 %v1477, %v1205
    %v1494 = vmul.f32 %v1478, %v1206
    %v1495 = vmul.f32 %v1479, %v1207
    %v1496 = vmul.f32 %v1480, %v1208
    %v1497 = vmul.f32 %v1481, %v1209
    %v1498 = vmul.f32 %v1482, %v1210
    %v1499 = vmul.f32 %v1483, %v1211
    %v1500 = vmul.f32 %v1484, %v1212
    %v1501 = vmul.f32 %v1485, %v1213
    %v1502 = vmul.f32 %v1486, %v1214
    %v1503 = vmul.f32 %v1487, %v1215
    %v1504 = vmul.f32 %v1488, %v1216
    %v1505 = vmul.f32 %v1489, %v1217
    %v1506 = vmul.f32 %v1490, %v1218
    %v1507 = vmul.f32 %v1491, %v1219
    %v1508 = vmul.f32 %v1492, %v1220
    %v1509 = vadd.f32 %v1493, -13.280682
    %v1510 = vadd.f32 %v1494, -13.280682
    %v1511 = vadd.f32 %v1495, -13.280682
    %v1512 = vadd.f32 %v1496, -13.280682
    %v1513 = vadd.f32 %v1497, -13.280682
    %v1514 = vadd.f32 %v1498, -13.280682
    %v1515 = vadd.f32 %v1499, -13.280682
    %v1516 = vadd.f32 %v1500, -13.280682
    %v1517 = vadd.f32 %v1501, -13.280682
    %v1518 = vadd.f32 %v1502, -13.280682
    %v1519 = vadd.f32 %v1503, -13.280682
    %v1520 = vadd.f32 %v1504, -13.280682
    %v1521 = vadd.f32 %v1505, -13.280682
    %v1522 = vadd.f32 %v1506, -13.280682
    %v1523 = vadd.f32 %v1507, -13.280682
    %v1524 = vadd.f32 %v1508, -13.280682
    %v1525 = vmul.f32 %v1509, %v1205
    %v1526 = vmul.f32 %v1510, %v1206
    %v1527 = vmul.f32 %v1511, %v1207
    %v1528 = vmul.f32 %v1512, %v1208
    %v1529 = vmul.f32 %v1513, %v1209
    %v1530 = vmul.f32 %v1514, %v1210
    %v1531 = vmul.f32 %v1515, %v1211
    %v1532 = vmul.f32 %v1516, %v1212
    %v1533 = vmul.f32 %v1517, %v1213
    %v1534 = vmul.f32 %v1518, %v1214
    %v1535 = vmul.f32 %v1519, %v1215
    %v1536 = vmul.f32 %v1520, %v1216
    %v1537 = vmul.f32 %v1521, %v1217
    %v1538 = vmul.f32 %v1522, %v1218
    %v1539 = vmul.f32 %v1523, %v1219
    %v1540 = vmul.f32 %v1524, %v1220
    %v1541 = vadd.f32 %v1525, 1.0
    %v1542 = vadd.f32 %v1526, 1.0
    %v1543 = vadd.f32 %v1527, 1.0
    %v1544 = vadd.f32 %v1528, 1.0
    %v1545 = vadd.f32 %v1529, 1.0
    %v1546 = vadd.f32 %v1530, 1.0
    %v1547 = vadd.f32 %v1531, 1.0
    %v1548 = vadd.f32 %v1532, 1.0
    %v1549 = vadd.f32 %v1533, 1.0
    %v1550 = vadd.f32 %v1534, 1.0
    %v1551 = vadd.f32 %v1535, 1.0
    %v1552 = vadd.f32 %v1536, 1.0
    %v1553 = vadd.f32 %v1537, 1.0
    %v1554 = vadd.f32 %v1538, 1.0
    %v1555 = vadd.f32 %v1539, 1.0
    %v1556 = vadd.f32 %v1540, 1.0
    %v1557 = vrcp.pop %v1541
    %v1558 = vmul.f32 %v1541, %v1557
    %v1559 = vsub.f32 1.0, %v1558
    %v1560 = vmul.f32 %v1557, %v1559
    %v1561 = vadd.f32 %v1557, %v1560
    %vm1562 = vweird.f32 %v1541
    %vm1563 = vweird.f32 %v1557
    %vm1564 = vmor %vm1562, %vm1563
    %v1565 = vsel %vm1564, %v1557, %v1561
    %v1566 = vand.u32 2147483647, %v1541
    %vm1567 = vcmp.eq.f32.partialorder %v1566, 8.507059e+37
    %v1568 = vand.u32 %v1541, 2147483648
    %v1569 = vor.u32 1.1754944e-38, %v1568
    %v1570 = vsel %vm1567, %v1569, %v1565
    %v1571 = vmul.f32 %v1381, %v1570
    %v1572 = vrcp.pop %v1542
    %v1573 = vmul.f32 %v1542, %v1572
    %v1574 = vsub.f32 1.0, %v1573
    %v1575 = vmul.f32 %v1572, %v1574
    %v1576 = vadd.f32 %v1572, %v1575
    %vm1577 = vweird.f32 %v1542
    %vm1578 = vweird.f32 %v1572
    %vm1579 = vmor %vm1577, %vm1578
    %v1580 = vsel %vm1579, %v1572, %v1576
    %v1581 = vand.u32 2147483647, %v1542
    %vm1582 = vcmp.eq.f32.partialorder %v1581, 8.507059e+37
    %v1583 = vand.u32 %v1542, 2147483648
    %v1584 = vor.u32 1.1754944e-38, %v1583
    %v1585 = vsel %vm1582, %v1584, %v1580
    %v1586 = vmul.f32 %v1382, %v1585
    %v1587 = vrcp.pop %v1543
    %v1588 = vmul.f32 %v1543, %v1587
    %v1589 = vsub.f32 1.0, %v1588
    %v1590 = vmul.f32 %v1587, %v1589
    %v1591 = vadd.f32 %v1587, %v1590
    %vm1592 = vweird.f32 %v1543
    %vm1593 = vweird.f32 %v1587
    %vm1594 = vmor %vm1592, %vm1593
    %v1595 = vsel %vm1594, %v1587, %v1591
    %v1596 = vand.u32 2147483647, %v1543
    %vm1597 = vcmp.eq.f32.partialorder %v1596, 8.507059e+37
    %v1598 = vand.u32 %v1543, 2147483648
    %v1599 = vor.u32 1.1754944e-38, %v1598
    %v1600 = vsel %vm1597, %v1599, %v1595
    %v1601 = vmul.f32 %v1383, %v1600
    %v1602 = vrcp.pop %v1544
    %v1603 = vmul.f32 %v1544, %v1602
    %v1604 = vsub.f32 1.0, %v1603
    %v1605 = vmul.f32 %v1602, %v1604
    %v1606 = vadd.f32 %v1602, %v1605
    %vm1607 = vweird.f32 %v1544
    %vm1608 = vweird.f32 %v1602
    %vm1609 = vmor %vm1607, %vm1608
    %v1610 = vsel %vm1609, %v1602, %v1606
    %v1611 = vand.u32 2147483647, %v1544
    %vm1612 = vcmp.eq.f32.partialorder %v1611, 8.507059e+37
    %v1613 = vand.u32 %v1544, 2147483648
    %v1614 = vor.u32 1.1754944e-38, %v1613
    %v1615 = vsel %vm1612, %v1614, %v1610
    %v1616 = vmul.f32 %v1384, %v1615
    %v1617 = vrcp.pop %v1545
    %v1618 = vmul.f32 %v1545, %v1617
    %v1619 = vsub.f32 1.0, %v1618
    %v1620 = vmul.f32 %v1617, %v1619
    %v1621 = vadd.f32 %v1617, %v1620
    %vm1622 = vweird.f32 %v1545
    %vm1623 = vweird.f32 %v1617
    %vm1624 = vmor %vm1622, %vm1623
    %v1625 = vsel %vm1624, %v1617, %v1621
    %v1626 = vand.u32 2147483647, %v1545
    %vm1627 = vcmp.eq.f32.partialorder %v1626, 8.507059e+37
    %v1628 = vand.u32 %v1545, 2147483648
    %v1629 = vor.u32 1.1754944e-38, %v1628
    %v1630 = vsel %vm1627, %v1629, %v1625
    %v1631 = vmul.f32 %v1385, %v1630
    %v1632 = vrcp.pop %v1546
    %v1633 = vmul.f32 %v1546, %v1632
    %v1634 = vsub.f32 1.0, %v1633
    %v1635 = vmul.f32 %v1632, %v1634
    %v1636 = vadd.f32 %v1632, %v1635
    %vm1637 = vweird.f32 %v1546
    %vm1638 = vweird.f32 %v1632
    %vm1639 = vmor %vm1637, %vm1638
    %v1640 = vsel %vm1639, %v1632, %v1636
    %v1641 = vand.u32 2147483647, %v1546
    %vm1642 = vcmp.eq.f32.partialorder %v1641, 8.507059e+37
    %v1643 = vand.u32 %v1546, 2147483648
    %v1644 = vor.u32 1.1754944e-38, %v1643
    %v1645 = vsel %vm1642, %v1644, %v1640
    %v1646 = vmul.f32 %v1386, %v1645
    %v1647 = vrcp.pop %v1547
    %v1648 = vmul.f32 %v1547, %v1647
    %v1649 = vsub.f32 1.0, %v1648
    %v1650 = vmul.f32 %v1647, %v1649
    %v1651 = vadd.f32 %v1647, %v1650
    %vm1652 = vweird.f32 %v1547
    %vm1653 = vweird.f32 %v1647
    %vm1654 = vmor %vm1652, %vm1653
    %v1655 = vsel %vm1654, %v1647, %v1651
    %v1656 = vand.u32 2147483647, %v1547
    %vm1657 = vcmp.eq.f32.partialorder %v1656, 8.507059e+37
    %v1658 = vand.u32 %v1547, 2147483648
    %v1659 = vor.u32 1.1754944e-38, %v1658
    %v1660 = vsel %vm1657, %v1659, %v1655
    %v1661 = vmul.f32 %v1387, %v1660
    %v1662 = vrcp.pop %v1548
    %v1663 = vmul.f32 %v1548, %v1662
    %v1664 = vsub.f32 1.0, %v1663
    %v1665 = vmul.f32 %v1662, %v1664
    %v1666 = vadd.f32 %v1662, %v1665
    %vm1667 = vweird.f32 %v1548
    %vm1668 = vweird.f32 %v1662
    %vm1669 = vmor %vm1667, %vm1668
    %v1670 = vsel %vm1669, %v1662, %v1666
    %v1671 = vand.u32 2147483647, %v1548
    %vm1672 = vcmp.eq.f32.partialorder %v1671, 8.507059e+37
    %v1673 = vand.u32 %v1548, 2147483648
    %v1674 = vor.u32 1.1754944e-38, %v1673
    %v1675 = vsel %vm1672, %v1674, %v1670
    %v1676 = vmul.f32 %v1388, %v1675
    %v1677 = vrcp.pop %v1549
    %v1678 = vmul.f32 %v1549, %v1677
    %v1679 = vsub.f32 1.0, %v1678
    %v1680 = vmul.f32 %v1677, %v1679
    %v1681 = vadd.f32 %v1677, %v1680
    %vm1682 = vweird.f32 %v1549
    %vm1683 = vweird.f32 %v1677
    %vm1684 = vmor %vm1682, %vm1683
    %v1685 = vsel %vm1684, %v1677, %v1681
    %v1686 = vand.u32 2147483647, %v1549
    %vm1687 = vcmp.eq.f32.partialorder %v1686, 8.507059e+37
    %v1688 = vand.u32 %v1549, 2147483648
    %v1689 = vor.u32 1.1754944e-38, %v1688
    %v1690 = vsel %vm1687, %v1689, %v1685
    %v1691 = vmul.f32 %v1389, %v1690
    %v1692 = vrcp.pop %v1550
    %v1693 = vmul.f32 %v1550, %v1692
    %v1694 = vsub.f32 1.0, %v1693
    %v1695 = vmul.f32 %v1692, %v1694
    %v1696 = vadd.f32 %v1692, %v1695
    %vm1697 = vweird.f32 %v1550
    %vm1698 = vweird.f32 %v1692
    %vm1699 = vmor %vm1697, %vm1698
    %v1700 = vsel %vm1699, %v1692, %v1696
    %v1701 = vand.u32 2147483647, %v1550
    %vm1702 = vcmp.eq.f32.partialorder %v1701, 8.507059e+37
    %v1703 = vand.u32 %v1550, 2147483648
    %v1704 = vor.u32 1.1754944e-38, %v1703
    %v1705 = vsel %vm1702, %v1704, %v1700
    %v1706 = vmul.f32 %v1390, %v1705
    %v1707 = vrcp.pop %v1551
    %v1708 = vmul.f32 %v1551, %v1707
    %v1709 = vsub.f32 1.0, %v1708
    %v1710 = vmul.f32 %v1707, %v1709
    %v1711 = vadd.f32 %v1707, %v1710
    %vm1712 = vweird.f32 %v1551
    %vm1713 = vweird.f32 %v1707
    %vm1714 = vmor %vm1712, %vm1713
    %v1715 = vsel %vm1714, %v1707, %v1711
    %v1716 = vand.u32 2147483647, %v1551
    %vm1717 = vcmp.eq.f32.partialorder %v1716, 8.507059e+37
    %v1718 = vand.u32 %v1551, 2147483648
    %v1719 = vor.u32 1.1754944e-38, %v1718
    %v1720 = vsel %vm1717, %v1719, %v1715
    %v1721 = vmul.f32 %v1391, %v1720
    %v1722 = vrcp.pop %v1552
    %v1723 = vmul.f32 %v1552, %v1722
    %v1724 = vsub.f32 1.0, %v1723
    %v1725 = vmul.f32 %v1722, %v1724
    %v1726 = vadd.f32 %v1722, %v1725
    %vm1727 = vweird.f32 %v1552
    %vm1728 = vweird.f32 %v1722
    %vm1729 = vmor %vm1727, %vm1728
    %v1730 = vsel %vm1729, %v1722, %v1726
    %v1731 = vand.u32 2147483647, %v1552
    %vm1732 = vcmp.eq.f32.partialorder %v1731, 8.507059e+37
    %v1733 = vand.u32 %v1552, 2147483648
    %v1734 = vor.u32 1.1754944e-38, %v1733
    %v1735 = vsel %vm1732, %v1734, %v1730
    %v1736 = vmul.f32 %v1392, %v1735
    %v1737 = vrcp.pop %v1553
    %v1738 = vmul.f32 %v1553, %v1737
    %v1739 = vsub.f32 1.0, %v1738
    %v1740 = vmul.f32 %v1737, %v1739
    %v1741 = vadd.f32 %v1737, %v1740
    %vm1742 = vweird.f32 %v1553
    %vm1743 = vweird.f32 %v1737
    %vm1744 = vmor %vm1742, %vm1743
    %v1745 = vsel %vm1744, %v1737, %v1741
    %v1746 = vand.u32 2147483647, %v1553
    %vm1747 = vcmp.eq.f32.partialorder %v1746, 8.507059e+37
    %v1748 = vand.u32 %v1553, 2147483648
    %v1749 = vor.u32 1.1754944e-38, %v1748
    %v1750 = vsel %vm1747, %v1749, %v1745
    %v1751 = vmul.f32 %v1393, %v1750
    %v1752 = vrcp.pop %v1554
    %v1753 = vmul.f32 %v1554, %v1752
    %v1754 = vsub.f32 1.0, %v1753
    %v1755 = vmul.f32 %v1752, %v1754
    %v1756 = vadd.f32 %v1752, %v1755
    %vm1757 = vweird.f32 %v1554
    %vm1758 = vweird.f32 %v1752
    %vm1759 = vmor %vm1757, %vm1758
    %v1760 = vsel %vm1759, %v1752, %v1756
    %v1761 = vand.u32 2147483647, %v1554
    %vm1762 = vcmp.eq.f32.partialorder %v1761, 8.507059e+37
    %v1763 = vand.u32 %v1554, 2147483648
    %v1764 = vor.u32 1.1754944e-38, %v1763
    %v1765 = vsel %vm1762, %v1764, %v1760
    %v1766 = vmul.f32 %v1394, %v1765
    %v1767 = vrcp.pop %v1555
    %v1768 = vmul.f32 %v1555, %v1767
    %v1769 = vsub.f32 1.0, %v1768
    %v1770 = vmul.f32 %v1767, %v1769
    %v1771 = vadd.f32 %v1767, %v1770
    %vm1772 = vweird.f32 %v1555
    %vm1773 = vweird.f32 %v1767
    %vm1774 = vmor %vm1772, %vm1773
    %v1775 = vsel %vm1774, %v1767, %v1771
    %v1776 = vand.u32 2147483647, %v1555
    %vm1777 = vcmp.eq.f32.partialorder %v1776, 8.507059e+37
    %v1778 = vand.u32 %v1555, 2147483648
    %v1779 = vor.u32 1.1754944e-38, %v1778
    %v1780 = vsel %vm1777, %v1779, %v1775
    %v1781 = vmul.f32 %v1395, %v1780
    %v1782 = vrcp.pop %v1556
    %v1783 = vmul.f32 %v1556, %v1782
    %v1784 = vsub.f32 1.0, %v1783
    %v1785 = vmul.f32 %v1782, %v1784
    %v1786 = vadd.f32 %v1782, %v1785
    %vm1787 = vweird.f32 %v1556
    %vm1788 = vweird.f32 %v1782
    %vm1789 = vmor %vm1787, %vm1788
    %v1790 = vsel %vm1789, %v1782, %v1786
    %v1791 = vand.u32 2147483647, %v1556
    %vm1792 = vcmp.eq.f32.partialorder %v1791, 8.507059e+37
    %v1793 = vand.u32 %v1556, 2147483648
    %v1794 = vor.u32 1.1754944e-38, %v1793
    %v1795 = vsel %vm1792, %v1794, %v1790
    %v1796 = vmul.f32 %v1396, %v1795
    %vm1797 = vcmp.lt.f32.partialorder %v389, 0.02425
    %vm1798 = vcmp.lt.f32.partialorder %v390, 0.02425
    %vm1799 = vcmp.lt.f32.partialorder %v391, 0.02425
    %vm1800 = vcmp.lt.f32.partialorder %v392, 0.02425
    %vm1801 = vcmp.lt.f32.partialorder %v393, 0.02425
    %vm1802 = vcmp.lt.f32.partialorder %v394, 0.02425
    %vm1803 = vcmp.lt.f32.partialorder %v395, 0.02425
    %vm1804 = vcmp.lt.f32.partialorder %v396, 0.02425
    %vm1805 = vcmp.lt.f32.partialorder %v397, 0.02425
    %vm1806 = vcmp.lt.f32.partialorder %v398, 0.02425
    %vm1807 = vcmp.lt.f32.partialorder %v399, 0.02425
    %vm1808 = vcmp.lt.f32.partialorder %v400, 0.02425
    %vm1809 = vcmp.lt.f32.partialorder %v401, 0.02425
    %vm1810 = vcmp.lt.f32.partialorder %v402, 0.02425
    %vm1811 = vcmp.lt.f32.partialorder %v403, 0.02425
    %vm1812 = vcmp.lt.f32.partialorder %v404, 0.02425
    %v1813 = vsel %vm1797, %v947, %v1571
    %v1814 = vsel %vm1798, %v962, %v1586
    %v1815 = vsel %vm1799, %v977, %v1601
    %v1816 = vsel %vm1800, %v992, %v1616
    %v1817 = vsel %vm1801, %v1007, %v1631
    %v1818 = vsel %vm1802, %v1022, %v1646
    %v1819 = vsel %vm1803, %v1037, %v1661
    %v1820 = vsel %vm1804, %v1052, %v1676
    %v1821 = vsel %vm1805, %v1067, %v1691
    %v1822 = vsel %vm1806, %v1082, %v1706
    %v1823 = vsel %vm1807, %v1097, %v1721
    %v1824 = vsel %vm1808, %v1112, %v1736
    %v1825 = vsel %vm1809, %v1127, %v1751
    %v1826 = vsel %vm1810, %v1142, %v1766
    %v1827 = vsel %vm1811, %v1157, %v1781
    %v1828 = vsel %vm1812, %v1172, %v1796
    %v1829 = vshrl.u32 %v325, 31
    %v1830 = vshrl.u32 %v326, 31
    %v1831 = vshrl.u32 %v327, 31
    %v1832 = vshrl.u32 %v328, 31
    %v1833 = vshrl.u32 %v329, 31
    %v1834 = vshrl.u32 %v330, 31
    %v1835 = vshrl.u32 %v331, 31
    %v1836 = vshrl.u32 %v332, 31
    %v1837 = vshrl.u32 %v333, 31
    %v1838 = vshrl.u32 %v334, 31
    %v1839 = vshrl.u32 %v335, 31
    %v1840 = vshrl.u32 %v336, 31
    %v1841 = vshrl.u32 %v337, 31
    %v1842 = vshrl.u32 %v338, 31
    %v1843 = vshrl.u32 %v339, 31
    %v1844 = vshrl.u32 %v340, 31
    %vm1845 = vcmp.eq.s32.totalorder %v1829, 0
    %vm1846 = vcmp.eq.s32.totalorder %v1830, 0
    %vm1847 = vcmp.eq.s32.totalorder %v1831, 0
    %vm1848 = vcmp.eq.s32.totalorder %v1832, 0
    %vm1849 = vcmp.eq.s32.totalorder %v1833, 0
    %vm1850 = vcmp.eq.s32.totalorder %v1834, 0
    %vm1851 = vcmp.eq.s32.totalorder %v1835, 0
    %vm1852 = vcmp.eq.s32.totalorder %v1836, 0
    %vm1853 = vcmp.eq.s32.totalorder %v1837, 0
    %vm1854 = vcmp.eq.s32.totalorder %v1838, 0
    %vm1855 = vcmp.eq.s32.totalorder %v1839, 0
    %vm1856 = vcmp.eq.s32.totalorder %v1840, 0
    %vm1857 = vcmp.eq.s32.totalorder %v1841, 0
    %vm1858 = vcmp.eq.s32.totalorder %v1842, 0
    %vm1859 = vcmp.eq.s32.totalorder %v1843, 0
    %vm1860 = vcmp.eq.s32.totalorder %v1844, 0
    %v1861 = vsub.f32 0.0, %v1813
    %v1862 = vsub.f32 0.0, %v1814
    %v1863 = vsub.f32 0.0, %v1815
    %v1864 = vsub.f32 0.0, %v1816
    %v1865 = vsub.f32 0.0, %v1817
    %v1866 = vsub.f32 0.0, %v1818
    %v1867 = vsub.f32 0.0, %v1819
    %v1868 = vsub.f32 0.0, %v1820
    %v1869 = vsub.f32 0.0, %v1821
    %v1870 = vsub.f32 0.0, %v1822
    %v1871 = vsub.f32 0.0, %v1823
    %v1872 = vsub.f32 0.0, %v1824
    %v1873 = vsub.f32 0.0, %v1825
    %v1874 = vsub.f32 0.0, %v1826
    %v1875 = vsub.f32 0.0, %v1827
    %v1876 = vsub.f32 0.0, %v1828
    %v1877 = vsel %vm1845, %v1813, %v1861
    %v1878 = vsel %vm1846, %v1814, %v1862
    %v1879 = vsel %vm1847, %v1815, %v1863
    %v1880 = vsel %vm1848, %v1816, %v1864
    %v1881 = vsel %vm1849, %v1817, %v1865
    %v1882 = vsel %vm1850, %v1818, %v1866
    %v1883 = vsel %vm1851, %v1819, %v1867
    %v1884 = vsel %vm1852, %v1820, %v1868
    %v1885 = vsel %vm1853, %v1821, %v1869
    %v1886 = vsel %vm1854, %v1822, %v1870
    %v1887 = vsel %vm1855, %v1823, %v1871
    %v1888 = vsel %vm1856, %v1824, %v1872
    %v1889 = vsel %vm1857, %v1825, %v1873
    %v1890 = vsel %vm1858, %v1826, %v1874
    %v1891 = vsel %vm1859, %v1827, %v1875
    %v1892 = vsel %vm1860, %v1828, %v1876
    %v1893 = vld [vmem:[#allocation3] sm:$0xff]
    %v1894 = vld [vmem:[#allocation3 + $0x8] sm:$0xff]
    %v1911 = vrot.slane %v1878, 7
    %v1912 = vrot.slane %v1879, 6
    %v1913 = vrot.slane %v1880, 5
    %v1914 = vrot.slane %v1881, 4
    %v1915 = vrot.slane %v1882, 3
    %v1916 = vrot.slane %v1883, 2
    %v1917 = vrot.slane %v1884, 1
    %v1918 = vrot.slane %v1886, 7
    %v1919 = vrot.slane %v1887, 6
    %v1920 = vrot.slane %v1888, 5
    %v1921 = vrot.slane %v1889, 4
    %v1922 = vrot.slane %v1890, 3
    %v1923 = vrot.slane %v1891, 2
    %v1924 = vrot.slane %v1892, 1
    %vm1925 = vcmask 1040384
    %v1926 = vsel %vm1925, %v1877, %v1911
    %vm1927 = vcmask 1042434
    %v1928 = vsel %vm1927, %v1912, %v1913
    %vm1929 = vcmask 1041408
    %v1930 = vsel %vm1929, %v1926, %v1928
    %vm1931 = vcmask 1044484
    %v1932 = vsel %vm1931, %v1914, %v1915
    %vm1933 = vcmask 1046534
    %v1934 = vsel %vm1933, %v1916, %v1917
    %vm1935 = vcmask 1045508
    %v1936 = vsel %vm1935, %v1932, %v1934
    %vm1937 = vcmask 1043456
    %v1938 = vsel %vm1937, %v1930, %v1936
    %v1939 = vsel %vm1925, %v1885, %v1918
    %v1940 = vsel %vm1927, %v1919, %v1920
    %v1941 = vsel %vm1929, %v1939, %v1940
    %v1942 = vsel %vm1931, %v1921, %v1922
    %v1943 = vsel %vm1933, %v1923, %v1924
    %v1944 = vsel %vm1935, %v1942, %v1943
    %v1945 = vsel %vm1937, %v1941, %v1944
    %v1948 = vadd.f32 %v1893, %v1938
    %v1949 = vadd.f32 %v1894, %v1945
    %1950 = vst [vmem:[#allocation6] sm:$0xff] %v1948
    %1951 = vst [vmem:[#allocation6 + $0x8] sm:$0xff] %v1949
    // Predicated region
    $region14: #{tpu_custom_call.1} parent=1 // pred_check
      _
    $region15: #{tpu_custom_call.1} parent=1 // pred_check_branch
      %1953 = sbr.rel (0) target = $region17
    $region16: #{tpu_custom_call.1} parent=1 // pred_region
      %1955 = vsyncadd [#allocation5], 0
      %s1957 = sshll.u32 [#allocation6], 4
      %s1958 = int_to_ptr.vmem [resolvable:$true] %s1957
      %s1959 = sshll.u32 %s2, 4
      %s1960 = int_to_ptr.hbm [resolvable:$true] %s1959
      %1962 = dma.vmem_to_hbm [thread:$0]  %s1958, 256, %s1960, [#allocation5]
    $region17: #{tpu_custom_call.1} parent=1 // pred_fallthru
      _
    // Predicated region
    $region18: #{tpu_custom_call.1} parent=1 // pred_check
      _
    $region19: #{tpu_custom_call.1} parent=1 // pred_check_branch
      %1964 = sbr.rel (0) target = $region21
    $region20: #{tpu_custom_call.1} parent=1 // pred_region
      %1966 = dma.done [#allocation5], 256
    $region21: #{tpu_custom_call.1} parent=1 // pred_fallthru
      _
    %1967 = vsyncpa [#allocation4], 1
    %1968 = vsyncpa [#allocation5], 1

</llo_original>
